<compile_context>
chip_gen: v5e
topology: v5e:2x2
jax: 0.10.0
libtpu: 0.0.40
codegen_flags: <defaults>
</compile_context>

<pallas_src>
import functools

import jax
import jax.numpy as jnp
from jax.experimental import pallas as pl
from jax.experimental.pallas import tpu as pltpu


# ----------------------------------------------------------------------------
# Fused kernel: projections + per-head attention + output projection
# ----------------------------------------------------------------------------
def _cross_attention_kernel(
    x_ref,        # (1, TQ, query_dim)
    ctx_ref,      # (1, Nc, context_dim)
    wq_ref,       # (query_dim, inner_dim)      -- softmax scale pre-folded
    wkv_ref,      # (context_dim, 2*inner_dim)  -- [Wk | Wv] fused
    wout_ref,     # (inner_dim, query_dim)
    bout_ref,     # (1, query_dim), f32
    o_ref,        # (1, TQ, query_dim)
    kv_ref,       # scratch (Nc, 2*inner_dim)   -- per-batch K|V projection
    out_all_ref,  # scratch (TQ, inner_dim) f32 -- per-head attention outputs
    *,
    heads,
    dim_head,
    inner_dim,
    compute_dtype,
    approx_recip,
):
    cd = compute_dtype

    # K/V projection once per batch (the query-tile axis is "arbitrary", so
    # tile 0 of a batch always runs before its other tiles on the same core).
    @pl.when(pl.program_id(1) == 0)
    def _():
        kv = jnp.dot(ctx_ref[0], wkv_ref[...], preferred_element_type=jnp.float32)
        kv_ref[...] = kv.astype(cd)

    # Q projection for this query tile (scale already folded into Wq).
    q_all = jnp.dot(x_ref[0], wq_ref[...], preferred_element_type=jnp.float32)  # (TQ, inner) f32

    # Per-head attention; each head's output lands in its lane slice of the
    # out_all scratch so the output projection below is a single full-K matmul.
    # (heads is small here; for large head counts switch to lax.fori_loop with
    #  pl.ds(h*dim_head, dim_head) to bound live ranges.)
    for h in range(heads):
        lo = h * dim_head
        hi = lo + dim_head
        q = q_all[:, lo:hi].astype(cd)                        # (TQ, d)
        k = kv_ref[:, lo:hi]                                  # (Nc, d)
        v = kv_ref[:, inner_dim + lo:inner_dim + hi]          # (Nc, d)

        # sim = q @ k.T via last-dim contraction (no explicit transpose).
        sim = jax.lax.dot_general(
            q, k, (((1,), (1,)), ((), ())), preferred_element_type=jnp.float32
        )                                                     # (TQ, Nc) f32
        sim = sim - jnp.max(sim, axis=-1, keepdims=True)
        p = jnp.exp(sim)
        attn = p * pl.reciprocal(jnp.sum(p, axis=-1, keepdims=True), approx=approx_recip)
        out_all_ref[:, lo:hi] = jnp.dot(
            attn.astype(cd), v, preferred_element_type=jnp.float32
        )

    # Single full-K output projection + bias; lane-dense (TQ, query_dim) store.
    acc = jnp.dot(out_all_ref[...].astype(cd), wout_ref[...],
                  preferred_element_type=jnp.float32)
    o_ref[0] = (acc + bout_ref[...]).astype(o_ref.dtype)


# ----------------------------------------------------------------------------
# CrossAttention forward
# ----------------------------------------------------------------------------
def cross_attention_forward(params, x, context, heads, *, mxu_dtype=jnp.float32):
    """
    params: dict with PyTorch-shaped weights
        'to_q_w' (inner, query_dim), 'to_k_w' (inner, context_dim),
        'to_v_w' (inner, context_dim), 'to_out_w' (query_dim, inner),
        'to_out_b' (query_dim,)
    x:       (B, Nq, query_dim)
    context: (B, Nc, context_dim)
    mxu_dtype: jnp.float32 (exact) or jnp.bfloat16 (bf16 MXU operands,
               f32 accumulation — ~3x MXU throughput, looser rounding).
    """
    B, Nq, query_dim = x.shape
    _, Nc, context_dim = context.shape
    inner_dim = params["to_q_w"].shape[0]
    dim_head = inner_dim // heads
    scale = float(dim_head) ** -0.5

    cd = jnp.dtype(mxu_dtype)
    use_bf16 = cd == jnp.dtype(jnp.bfloat16)
    approx_recip = bool(use_bf16)   # exact divide on the f32 path (2e-4 tolerance)

    # One-time, weight-sized glue (no activation-sized transposes anywhere).
    wq_t = (params["to_q_w"] * scale).T.astype(cd)                      # (qd, inner)
    wkv_t = jnp.concatenate(
        [params["to_k_w"], params["to_v_w"]], axis=0
    ).T.astype(cd)                                                      # (cd, 2*inner)
    wout_t = params["to_out_w"].T.astype(cd)                            # (inner, qd)
    bout = params["to_out_b"].reshape(1, query_dim).astype(jnp.float32)
    x_in = x.astype(cd)
    ctx_in = context.astype(cd)

    # Query-row tiling (full Nq when small; 128-row tiles otherwise).
    TQ = Nq if Nq <= 128 else 128
    nq_tiles = pl.cdiv(Nq, TQ)

    kernel = functools.partial(
        _cross_attention_kernel,
        heads=heads,
        dim_head=dim_head,
        inner_dim=inner_dim,
        compute_dtype=cd,
        approx_recip=approx_recip,
    )

    def build(single_buffer_resident):
        def res_spec(shape, imap):
            # Resident block (index constant within a batch): single buffer.
            if single_buffer_resident:
                try:
                    return pl.BlockSpec(shape, imap, pipeline_mode=pl.Buffered(1))
                except TypeError:  # jax without BlockSpec.pipeline_mode
                    pass
            return pl.BlockSpec(shape, imap)

        return pl.pallas_call(
            kernel,
            out_shape=jax.ShapeDtypeStruct((B, Nq, query_dim), jnp.float32),
            grid=(B, nq_tiles),
            in_specs=[
                pl.BlockSpec((1, TQ, query_dim), lambda b, i: (b, i, 0)),     # x (pipelined)
                res_spec((1, Nc, context_dim), lambda b, i: (b, 0, 0)),       # context
                res_spec((query_dim, inner_dim), lambda b, i: (0, 0)),        # Wq (scaled)
                res_spec((context_dim, 2 * inner_dim), lambda b, i: (0, 0)),  # [Wk | Wv]
                res_spec((inner_dim, query_dim), lambda b, i: (0, 0)),        # Wout
                res_spec((1, query_dim), lambda b, i: (0, 0)),                # bias
            ],
            out_specs=pl.BlockSpec((1, TQ, query_dim), lambda b, i: (b, i, 0)),
            scratch_shapes=[
                pltpu.VMEM((Nc, 2 * inner_dim), cd),         # per-batch K|V projections
                pltpu.VMEM((TQ, inner_dim), jnp.float32),    # per-tile per-head outputs
            ],
            compiler_params=pltpu.CompilerParams(
                # batch: parallel (megacore); query tiles: arbitrary so the
                # per-batch KV scratch is always initialized at tile 0.
                dimension_semantics=("parallel", "arbitrary"),
                vmem_limit_bytes=32 * 1024 * 1024,
            ),
        )

    args = (x_in, ctx_in, wq_t, wkv_t, wout_t, bout)
    try:
        return build(True)(*args)
    except Exception:  # pragma: no cover — Buffered(1) unsupported: retry double-buffered
        return build(False)(*args)


# ----------------------------------------------------------------------------
# Pure-JAX reference (mirrors the PyTorch module, for correctness check)
# ----------------------------------------------------------------------------
def cross_attention_reference(params, x, context, heads):
    B, Nq, query_dim = x.shape
    _, Nc, _ = context.shape
    inner_dim = params["to_q_w"].shape[0]
    d = inner_dim // heads
    scale = float(d) ** -0.5

    q = x @ params["to_q_w"].T
    k = context @ params["to_k_w"].T
    v = context @ params["to_v_w"].T

    def split(t, n):
        return t.reshape(B, n, heads, d).transpose(0, 2, 1, 3).reshape(B * heads, n, d)

    q, k, v = split(q, Nq), split(k, Nc), split(v, Nc)
    sim = jnp.einsum("bid,bjd->bij", q, k) * scale
    attn = jax.nn.softmax(sim, axis=-1)
    out = jnp.einsum("bij,bjd->bid", attn, v)
    out = out.reshape(B, heads, Nq, d).transpose(0, 2, 1, 3).reshape(B, Nq, inner_dim)
    return out @ params["to_out_w"].T + params["to_out_b"]


# ----------------------------------------------------------------------------
# Main
# ----------------------------------------------------------------------------
if __name__ == "__main__":
    # Small config
    B = 2
    Nq = 16          # query sequence length
    Nc = 8           # context sequence length
    query_dim = 32
    context_dim = 24
    heads = 4
    dim_head = 16
    inner_dim = heads * dim_head

    key = jax.random.PRNGKey(0)
    keys = jax.random.split(key, 7)

    # Deterministic parameter init (synthetic, PyTorch-shaped weights).
    params = {
        "to_q_w": jax.random.normal(keys[0], (inner_dim, query_dim), jnp.float32) * 0.05,
        "to_k_w": jax.random.normal(keys[1], (inner_dim, context_dim), jnp.float32) * 0.05,
        "to_v_w": jax.random.normal(keys[2], (inner_dim, context_dim), jnp.float32) * 0.05,
        "to_out_w": jax.random.normal(keys[3], (query_dim, inner_dim), jnp.float32) * 0.05,
        "to_out_b": jax.random.normal(keys[4], (query_dim,), jnp.float32) * 0.01,
    }

    x = jax.random.normal(keys[5], (B, Nq, query_dim), jnp.float32)
    context = jax.random.normal(keys[6], (B, Nc, context_dim), jnp.float32)

    ref = cross_attention_reference(params, x, context, heads)

    # f32 MXU path (default): must match the reference tightly.
    out_f32 = jax.block_until_ready(cross_attention_forward(params, x, context, heads))
    assert out_f32.shape == (B, Nq, query_dim), out_f32.shape
    assert jnp.allclose(out_f32, ref, atol=2e-4, rtol=2e-4), "f32 path mismatch vs reference"

    # bf16-operand / f32-accumulation MXU path (review item #1), validated at a
    # bf16-appropriate tolerance (operand rounding alone exceeds 2e-4).
    out_bf16 = jax.block_until_ready(
        cross_attention_forward(params, x, context, heads, mxu_dtype=jnp.bfloat16)
    )
    assert out_bf16.shape == (B, Nq, query_dim), out_bf16.shape
    assert jnp.allclose(out_bf16, ref, atol=5e-3, rtol=5e-3), "bf16 path mismatch vs reference"

    print("KERNEL_OK")
</pallas_src>

<mosaic_0001>
module attributes {stable_mosaic.version = 11 : i64} {
  func.func @_cross_attention_kernel(%arg0: i32, %arg1: i32, %arg2: memref<1x16x32xf32, #tpu.memory_space<vmem>>, %arg3: memref<1x8x24xf32, #tpu.memory_space<vmem>>, %arg4: memref<32x64xf32, #tpu.memory_space<vmem>>, %arg5: memref<24x128xf32, #tpu.memory_space<vmem>>, %arg6: memref<64x32xf32, #tpu.memory_space<vmem>>, %arg7: memref<1x32xf32, #tpu.memory_space<vmem>>, %arg8: memref<1x16x32xf32, #tpu.memory_space<vmem>>, %arg9: memref<8x128xf32, #tpu.memory_space<vmem>>, %arg10: memref<16x64xf32, #tpu.memory_space<vmem>>) attributes {dimension_semantics = [#tpu.dimension_semantics<parallel>, #tpu.dimension_semantics<arbitrary>], iteration_bounds = array<i64: 2, 1>, scalar_prefetch = 0 : i64, scratch_operands = 2 : i64, tpu.core_type = #tpu.core_type<tc>, window_params = [{transform_indices = @transform_0, window_bounds = array<i64: 1, 16, 32>}, {pipeline_mode = #tpu.pipeline_mode<synchronous>, transform_indices = @transform_1, window_bounds = array<i64: 1, 8, 24>}, {pipeline_mode = #tpu.pipeline_mode<synchronous>, transform_indices = @transform_2, window_bounds = array<i64: 32, 64>}, {pipeline_mode = #tpu.pipeline_mode<synchronous>, transform_indices = @transform_3, window_bounds = array<i64: 24, 128>}, {pipeline_mode = #tpu.pipeline_mode<synchronous>, transform_indices = @transform_4, window_bounds = array<i64: 64, 32>}, {pipeline_mode = #tpu.pipeline_mode<synchronous>, transform_indices = @transform_5, window_bounds = array<i64: 1, 32>}, {transform_indices = @transform_6, window_bounds = array<i64: 1, 16, 32>}]} {
    %c0_i32 = arith.constant 0 : i32
    %0 = arith.cmpi eq, %arg1, %c0_i32 : i32
    %1 = arith.extui %0 : i1 to i32
    %c0_i32_0 = arith.constant 0 : i32
    %2 = arith.cmpi ne, %1, %c0_i32_0 : i32
    scf.if %2 {
      %c0_48 = arith.constant 0 : index
      %c0_49 = arith.constant 0 : index
      %c0_50 = arith.constant 0 : index
      %80 = vector.load %arg3[%c0_48, %c0_49, %c0_50] : memref<1x8x24xf32, #tpu.memory_space<vmem>>, vector<1x8x24xf32>
      %81 = vector.shape_cast %80 : vector<1x8x24xf32> to vector<8x24xf32>
      %c0_51 = arith.constant 0 : index
      %c0_52 = arith.constant 0 : index
      %82 = vector.load %arg5[%c0_51, %c0_52] : memref<24x128xf32, #tpu.memory_space<vmem>>, vector<24x128xf32>
      %cst_53 = arith.constant dense<0.000000e+00> : vector<8x128xf32>
      %83 = tpu.matmul %81, %82, %cst_53 {dimension_numbers = #tpu.dot_dimension_numbers<[1], [0], [0], [1], [0, 0, 1, 1], [], []>} : vector<8x24xf32>, vector<24x128xf32>, vector<8x128xf32> -> vector<8x128xf32>
      %c0_54 = arith.constant 0 : index
      %c0_55 = arith.constant 0 : index
      %84 = vector.load %arg9[%c0_54, %c0_55] : memref<8x128xf32, #tpu.memory_space<vmem>>, vector<8x128xf32>
      tpu.vector_store %arg9[%c0_54, %c0_55], %83 {strides = array<i32>} : memref<8x128xf32, #tpu.memory_space<vmem>>, vector<8x128xf32>,
    } else {
    }
    %c0 = arith.constant 0 : index
    %c0_1 = arith.constant 0 : index
    %c0_2 = arith.constant 0 : index
    %3 = vector.load %arg2[%c0, %c0_1, %c0_2] : memref<1x16x32xf32, #tpu.memory_space<vmem>>, vector<1x16x32xf32>
    %4 = vector.shape_cast %3 : vector<1x16x32xf32> to vector<16x32xf32>
    %c0_3 = arith.constant 0 : index
    %c0_4 = arith.constant 0 : index
    %5 = vector.load %arg4[%c0_3, %c0_4] : memref<32x64xf32, #tpu.memory_space<vmem>>, vector<32x64xf32>
    %cst = arith.constant dense<0.000000e+00> : vector<16x64xf32>
    %6 = tpu.matmul %4, %5, %cst {dimension_numbers = #tpu.dot_dimension_numbers<[1], [0], [0], [1], [0, 0, 1, 1], [], []>} : vector<16x32xf32>, vector<32x64xf32>, vector<16x64xf32> -> vector<16x64xf32>
    %7 = vector.extract_strided_slice %6 {offsets = [0, 0], sizes = [16, 16], strides = [1, 1]} : vector<16x64xf32> to vector<16x16xf32>
    %c0_5 = arith.constant 0 : index
    %c0_6 = arith.constant 0 : index
    %8 = vector.load %arg9[%c0_5, %c0_6] : memref<8x128xf32, #tpu.memory_space<vmem>>, vector<8x16xf32>
    %c0_7 = arith.constant 0 : index
    %c64 = arith.constant 64 : index
    %9 = vector.load %arg9[%c0_7, %c64] : memref<8x128xf32, #tpu.memory_space<vmem>>, vector<8x16xf32>
    %cst_8 = arith.constant dense<0.000000e+00> : vector<16x8xf32>
    %10 = tpu.matmul %7, %8, %cst_8 {dimension_numbers = #tpu.dot_dimension_numbers<[1], [1], [0], [0], [0, 0, 1, 0], [], []>} : vector<16x16xf32>, vector<8x16xf32>, vector<16x8xf32> -> vector<16x8xf32>
    %cst_9 = arith.constant dense<0xFF800000> : vector<16xf32>
    %11 = vector.multi_reduction <maximumf>, %10, %cst_9 [1] : vector<16x8xf32> to vector<16xf32>
    %12 = vector.shape_cast %11 : vector<16xf32> to vector<16x1xf32>
    %13 = vector.broadcast %12 : vector<16x1xf32> to vector<16x8xf32>
    %14 = arith.subf %10, %13 : vector<16x8xf32>
    %15 = math.exp %14 : vector<16x8xf32>
    %cst_10 = arith.constant dense<0.000000e+00> : vector<16xf32>
    %16 = vector.multi_reduction <add>, %15, %cst_10 [1] : vector<16x8xf32> to vector<16xf32>
    %17 = vector.shape_cast %16 : vector<16xf32> to vector<16x1xf32>
    %18 = tpu.reciprocal %17 : vector<16x1xf32> -> vector<16x1xf32>
    %19 = vector.broadcast %18 : vector<16x1xf32> to vector<16x8xf32>
    %20 = arith.mulf %15, %19 : vector<16x8xf32>
    %cst_11 = arith.constant dense<0.000000e+00> : vector<16x16xf32>
    %21 = tpu.matmul %20, %9, %cst_11 {dimension_numbers = #tpu.dot_dimension_numbers<[1], [0], [0], [1], [0, 0, 1, 1], [], []>} : vector<16x8xf32>, vector<8x16xf32>, vector<16x16xf32> -> vector<16x16xf32>
    %c0_12 = arith.constant 0 : index
    %c0_13 = arith.constant 0 : index
    %22 = vector.load %arg10[%c0_12, %c0_13] : memref<16x64xf32, #tpu.memory_space<vmem>>, vector<16x16xf32>
    tpu.vector_store %arg10[%c0_12, %c0_13], %21 {strides = array<i32>} : memref<16x64xf32, #tpu.memory_space<vmem>>, vector<16x16xf32>,
    %23 = vector.extract_strided_slice %6 {offsets = [0, 16], sizes = [16, 16], strides = [1, 1]} : vector<16x64xf32> to vector<16x16xf32>
    %c0_14 = arith.constant 0 : index
    %c16 = arith.constant 16 : index
    %24 = vector.load %arg9[%c0_14, %c16] : memref<8x128xf32, #tpu.memory_space<vmem>>, vector<8x16xf32>
    %c0_15 = arith.constant 0 : index
    %c80 = arith.constant 80 : index
    %25 = vector.load %arg9[%c0_15, %c80] : memref<8x128xf32, #tpu.memory_space<vmem>>, vector<8x16xf32>
    %cst_16 = arith.constant dense<0.000000e+00> : vector<16x8xf32>
    %26 = tpu.matmul %23, %24, %cst_16 {dimension_numbers = #tpu.dot_dimension_numbers<[1], [1], [0], [0], [0, 0, 1, 0], [], []>} : vector<16x16xf32>, vector<8x16xf32>, vector<16x8xf32> -> vector<16x8xf32>
    %cst_17 = arith.constant dense<0xFF800000> : vector<16xf32>
    %27 = vector.multi_reduction <maximumf>, %26, %cst_17 [1] : vector<16x8xf32> to vector<16xf32>
    %28 = vector.shape_cast %27 : vector<16xf32> to vector<16x1xf32>
    %29 = vector.broadcast %28 : vector<16x1xf32> to vector<16x8xf32>
    %30 = arith.subf %26, %29 : vector<16x8xf32>
    %31 = math.exp %30 : vector<16x8xf32>
    %cst_18 = arith.constant dense<0.000000e+00> : vector<16xf32>
    %32 = vector.multi_reduction <add>, %31, %cst_18 [1] : vector<16x8xf32> to vector<16xf32>
    %33 = vector.shape_cast %32 : vector<16xf32> to vector<16x1xf32>
    %34 = tpu.reciprocal %33 : vector<16x1xf32> -> vector<16x1xf32>
    %35 = vector.broadcast %34 : vector<16x1xf32> to vector<16x8xf32>
    %36 = arith.mulf %31, %35 : vector<16x8xf32>
    %cst_19 = arith.constant dense<0.000000e+00> : vector<16x16xf32>
    %37 = tpu.matmul %36, %25, %cst_19 {dimension_numbers = #tpu.dot_dimension_numbers<[1], [0], [0], [1], [0, 0, 1, 1], [], []>} : vector<16x8xf32>, vector<8x16xf32>, vector<16x16xf32> -> vector<16x16xf32>
    %c0_20 = arith.constant 0 : index
    %c16_21 = arith.constant 16 : index
    %38 = vector.load %arg10[%c0_20, %c16_21] : memref<16x64xf32, #tpu.memory_space<vmem>>, vector<16x16xf32>
    tpu.vector_store %arg10[%c0_20, %c16_21], %37 {strides = array<i32>} : memref<16x64xf32, #tpu.memory_space<vmem>>, vector<16x16xf32>,
    %39 = vector.extract_strided_slice %6 {offsets = [0, 32], sizes = [16, 16], strides = [1, 1]} : vector<16x64xf32> to vector<16x16xf32>
    %c0_22 = arith.constant 0 : index
    %c32 = arith.constant 32 : index
    %40 = vector.load %arg9[%c0_22, %c32] : memref<8x128xf32, #tpu.memory_space<vmem>>, vector<8x16xf32>
    %c0_23 = arith.constant 0 : index
    %c96 = arith.constant 96 : index
    %41 = vector.load %arg9[%c0_23, %c96] : memref<8x128xf32, #tpu.memory_space<vmem>>, vector<8x16xf32>
    %cst_24 = arith.constant dense<0.000000e+00> : vector<16x8xf32>
    %42 = tpu.matmul %39, %40, %cst_24 {dimension_numbers = #tpu.dot_dimension_numbers<[1], [1], [0], [0], [0, 0, 1, 0], [], []>} : vector<16x16xf32>, vector<8x16xf32>, vector<16x8xf32> -> vector<16x8xf32>
    %cst_25 = arith.constant dense<0xFF800000> : vector<16xf32>
    %43 = vector.multi_reduction <maximumf>, %42, %cst_25 [1] : vector<16x8xf32> to vector<16xf32>
    %44 = vector.shape_cast %43 : vector<16xf32> to vector<16x1xf32>
    %45 = vector.broadcast %44 : vector<16x1xf32> to vector<16x8xf32>
    %46 = arith.subf %42, %45 : vector<16x8xf32>
    %47 = math.exp %46 : vector<16x8xf32>
    %cst_26 = arith.constant dense<0.000000e+00> : vector<16xf32>
    %48 = vector.multi_reduction <add>, %47, %cst_26 [1] : vector<16x8xf32> to vector<16xf32>
    %49 = vector.shape_cast %48 : vector<16xf32> to vector<16x1xf32>
    %50 = tpu.reciprocal %49 : vector<16x1xf32> -> vector<16x1xf32>
    %51 = vector.broadcast %50 : vector<16x1xf32> to vector<16x8xf32>
    %52 = arith.mulf %47, %51 : vector<16x8xf32>
    %cst_27 = arith.constant dense<0.000000e+00> : vector<16x16xf32>
    %53 = tpu.matmul %52, %41, %cst_27 {dimension_numbers = #tpu.dot_dimension_numbers<[1], [0], [0], [1], [0, 0, 1, 1], [], []>} : vector<16x8xf32>, vector<8x16xf32>, vector<16x16xf32> -> vector<16x16xf32>
    %c0_28 = arith.constant 0 : index
    %c32_29 = arith.constant 32 : index
    %54 = vector.load %arg10[%c0_28, %c32_29] : memref<16x64xf32, #tpu.memory_space<vmem>>, vector<16x16xf32>
    tpu.vector_store %arg10[%c0_28, %c32_29], %53 {strides = array<i32>} : memref<16x64xf32, #tpu.memory_space<vmem>>, vector<16x16xf32>,
    %55 = vector.extract_strided_slice %6 {offsets = [0, 48], sizes = [16, 16], strides = [1, 1]} : vector<16x64xf32> to vector<16x16xf32>
    %c0_30 = arith.constant 0 : index
    %c48 = arith.constant 48 : index
    %56 = vector.load %arg9[%c0_30, %c48] : memref<8x128xf32, #tpu.memory_space<vmem>>, vector<8x16xf32>
    %c0_31 = arith.constant 0 : index
    %c112 = arith.constant 112 : index
    %57 = vector.load %arg9[%c0_31, %c112] : memref<8x128xf32, #tpu.memory_space<vmem>>, vector<8x16xf32>
    %cst_32 = arith.constant dense<0.000000e+00> : vector<16x8xf32>
    %58 = tpu.matmul %55, %56, %cst_32 {dimension_numbers = #tpu.dot_dimension_numbers<[1], [1], [0], [0], [0, 0, 1, 0], [], []>} : vector<16x16xf32>, vector<8x16xf32>, vector<16x8xf32> -> vector<16x8xf32>
    %cst_33 = arith.constant dense<0xFF800000> : vector<16xf32>
    %59 = vector.multi_reduction <maximumf>, %58, %cst_33 [1] : vector<16x8xf32> to vector<16xf32>
    %60 = vector.shape_cast %59 : vector<16xf32> to vector<16x1xf32>
    %61 = vector.broadcast %60 : vector<16x1xf32> to vector<16x8xf32>
    %62 = arith.subf %58, %61 : vector<16x8xf32>
    %63 = math.exp %62 : vector<16x8xf32>
    %cst_34 = arith.constant dense<0.000000e+00> : vector<16xf32>
    %64 = vector.multi_reduction <add>, %63, %cst_34 [1] : vector<16x8xf32> to vector<16xf32>
    %65 = vector.shape_cast %64 : vector<16xf32> to vector<16x1xf32>
    %66 = tpu.reciprocal %65 : vector<16x1xf32> -> vector<16x1xf32>
    %67 = vector.broadcast %66 : vector<16x1xf32> to vector<16x8xf32>
    %68 = arith.mulf %63, %67 : vector<16x8xf32>
    %cst_35 = arith.constant dense<0.000000e+00> : vector<16x16xf32>
    %69 = tpu.matmul %68, %57, %cst_35 {dimension_numbers = #tpu.dot_dimension_numbers<[1], [0], [0], [1], [0, 0, 1, 1], [], []>} : vector<16x8xf32>, vector<8x16xf32>, vector<16x16xf32> -> vector<16x16xf32>
    %c0_36 = arith.constant 0 : index
    %c48_37 = arith.constant 48 : index
    %70 = vector.load %arg10[%c0_36, %c48_37] : memref<16x64xf32, #tpu.memory_space<vmem>>, vector<16x16xf32>
    tpu.vector_store %arg10[%c0_36, %c48_37], %69 {strides = array<i32>} : memref<16x64xf32, #tpu.memory_space<vmem>>, vector<16x16xf32>,
    %c0_38 = arith.constant 0 : index
    %c0_39 = arith.constant 0 : index
    %71 = vector.load %arg10[%c0_38, %c0_39] : memref<16x64xf32, #tpu.memory_space<vmem>>, vector<16x64xf32>
    %c0_40 = arith.constant 0 : index
    %c0_41 = arith.constant 0 : index
    %72 = vector.load %arg6[%c0_40, %c0_41] : memref<64x32xf32, #tpu.memory_space<vmem>>, vector<64x32xf32>
    %cst_42 = arith.constant dense<0.000000e+00> : vector<16x32xf32>
    %73 = tpu.matmul %71, %72, %cst_42 {dimension_numbers = #tpu.dot_dimension_numbers<[1], [0], [0], [1], [0, 0, 1, 1], [], []>} : vector<16x64xf32>, vector<64x32xf32>, vector<16x32xf32> -> vector<16x32xf32>
    %c0_43 = arith.constant 0 : index
    %c0_44 = arith.constant 0 : index
    %74 = vector.load %arg7[%c0_43, %c0_44] : memref<1x32xf32, #tpu.memory_space<vmem>>, vector<1x32xf32>
    %75 = vector.broadcast %74 : vector<1x32xf32> to vector<16x32xf32>
    %76 = arith.addf %73, %75 : vector<16x32xf32>
    %c0_45 = arith.constant 0 : index
    %c0_46 = arith.constant 0 : index
    %c0_47 = arith.constant 0 : index
    %77 = vector.load %arg8[%c0_45, %c0_46, %c0_47] : memref<1x16x32xf32, #tpu.memory_space<vmem>>, vector<1x16x32xf32>
    %78 = vector.shape_cast %77 : vector<1x16x32xf32> to vector<16x32xf32>
    %79 = vector.shape_cast %76 : vector<16x32xf32> to vector<1x16x32xf32>
    tpu.vector_store %arg8[%c0_45, %c0_46, %c0_47], %79 {strides = array<i32>} : memref<1x16x32xf32, #tpu.memory_space<vmem>>, vector<1x16x32xf32>,
    return
  }
  func.func @transform_0(%arg0: i32, %arg1: i32) -> (i32, i32, i32) {
    %c0_i32 = arith.constant 0 : i32
    %c0_i32_0 = arith.constant 0 : i32
    return %arg0, %arg1, %c0_i32 : i32, i32, i32
  }
  func.func @transform_1(%arg0: i32, %arg1: i32) -> (i32, i32, i32) {
    %c0_i32 = arith.constant 0 : i32
    %c0_i32_0 = arith.constant 0 : i32
    %c0_i32_1 = arith.constant 0 : i32
    return %arg0, %c0_i32, %c0_i32_0 : i32, i32, i32
  }
  func.func @transform_2(%arg0: i32, %arg1: i32) -> (i32, i32) {
    %c0_i32 = arith.constant 0 : i32
    %c0_i32_0 = arith.constant 0 : i32
    %c0_i32_1 = arith.constant 0 : i32
    return %c0_i32, %c0_i32_0 : i32, i32
  }
  func.func @transform_3(%arg0: i32, %arg1: i32) -> (i32, i32) {
    %c0_i32 = arith.constant 0 : i32
    %c0_i32_0 = arith.constant 0 : i32
    %c0_i32_1 = arith.constant 0 : i32
    return %c0_i32, %c0_i32_0 : i32, i32
  }
  func.func @transform_4(%arg0: i32, %arg1: i32) -> (i32, i32) {
    %c0_i32 = arith.constant 0 : i32
    %c0_i32_0 = arith.constant 0 : i32
    %c0_i32_1 = arith.constant 0 : i32
    return %c0_i32, %c0_i32_0 : i32, i32
  }
  func.func @transform_5(%arg0: i32, %arg1: i32) -> (i32, i32) {
    %c0_i32 = arith.constant 0 : i32
    %c0_i32_0 = arith.constant 0 : i32
    %c0_i32_1 = arith.constant 0 : i32
    return %c0_i32, %c0_i32_0 : i32, i32
  }
  func.func @transform_6(%arg0: i32, %arg1: i32) -> (i32, i32, i32) {
    %c0_i32 = arith.constant 0 : i32
    %c0_i32_0 = arith.constant 0 : i32
    return %arg0, %arg1, %c0_i32 : i32, i32, i32
  }
}

module attributes {stable_mosaic.version = 11 : i64} {
  func.func @_cross_attention_kernel(%arg0: i32, %arg1: i32, %arg2: memref<1x16x32xf32, #tpu.memory_space<vmem>>, %arg3: memref<1x8x24xf32, #tpu.memory_space<vmem>>, %arg4: memref<32x64xf32, #tpu.memory_space<vmem>>, %arg5: memref<24x128xf32, #tpu.memory_space<vmem>>, %arg6: memref<64x32xf32, #tpu.memory_space<vmem>>, %arg7: memref<1x32xf32, #tpu.memory_space<vmem>>, %arg8: memref<1x16x32xf32, #tpu.memory_space<vmem>>, %arg9: memref<8x128xf32, #tpu.memory_space<vmem>>, %arg10: memref<16x64xf32, #tpu.memory_space<vmem>>) attributes {dimension_semantics = [#tpu.dimension_semantics<parallel>, #tpu.dimension_semantics<arbitrary>], iteration_bounds = array<i64: 2, 1>, scalar_prefetch = 0 : i64, scratch_operands = 2 : i64, tpu.core_type = #tpu.core_type<tc>, window_params = [{transform_indices = @transform_0, window_bounds = array<i64: 1, 16, 32>}, {transform_indices = @transform_1, window_bounds = array<i64: 1, 8, 24>}, {pipeline_mode = #tpu.pipeline_mode<synchronous>, transform_indices = @transform_2, window_bounds = array<i64: 32, 64>}, {pipeline_mode = #tpu.pipeline_mode<synchronous>, transform_indices = @transform_3, window_bounds = array<i64: 24, 128>}, {pipeline_mode = #tpu.pipeline_mode<synchronous>, transform_indices = @transform_4, window_bounds = array<i64: 64, 32>}, {pipeline_mode = #tpu.pipeline_mode<synchronous>, transform_indices = @transform_5, window_bounds = array<i64: 1, 32>}, {transform_indices = @transform_6, window_bounds = array<i64: 1, 16, 32>}]} {
    %c0_i32 = arith.constant 0 : i32
    %0 = arith.cmpi eq, %arg1, %c0_i32 : i32
    %1 = arith.extui %0 : i1 to i32
    %c0_i32_0 = arith.constant 0 : i32
    %2 = arith.cmpi ne, %1, %c0_i32_0 : i32
    scf.if %2 {
      %c0_48 = arith.constant 0 : index
      %c0_49 = arith.constant 0 : index
      %c0_50 = arith.constant 0 : index
      %80 = vector.load %arg3[%c0_48, %c0_49, %c0_50] : memref<1x8x24xf32, #tpu.memory_space<vmem>>, vector<1x8x24xf32>
      %81 = vector.shape_cast %80 : vector<1x8x24xf32> to vector<8x24xf32>
      %c0_51 = arith.constant 0 : index
      %c0_52 = arith.constant 0 : index
      %82 = vector.load %arg5[%c0_51, %c0_52] : memref<24x128xf32, #tpu.memory_space<vmem>>, vector<24x128xf32>
      %cst_53 = arith.constant dense<0.000000e+00> : vector<8x128xf32>
      %83 = tpu.matmul %81, %82, %cst_53 {dimension_numbers = #tpu.dot_dimension_numbers<[1], [0], [0], [1], [0, 0, 1, 1], [], []>} : vector<8x24xf32>, vector<24x128xf32>, vector<8x128xf32> -> vector<8x128xf32>
      %c0_54 = arith.constant 0 : index
      %c0_55 = arith.constant 0 : index
      %84 = vector.load %arg9[%c0_54, %c0_55] : memref<8x128xf32, #tpu.memory_space<vmem>>, vector<8x128xf32>
      tpu.vector_store %arg9[%c0_54, %c0_55], %83 {strides = array<i32>} : memref<8x128xf32, #tpu.memory_space<vmem>>, vector<8x128xf32>,
    } else {
    }
    %c0 = arith.constant 0 : index
    %c0_1 = arith.constant 0 : index
    %c0_2 = arith.constant 0 : index
    %3 = vector.load %arg2[%c0, %c0_1, %c0_2] : memref<1x16x32xf32, #tpu.memory_space<vmem>>, vector<1x16x32xf32>
    %4 = vector.shape_cast %3 : vector<1x16x32xf32> to vector<16x32xf32>
    %c0_3 = arith.constant 0 : index
    %c0_4 = arith.constant 0 : index
    %5 = vector.load %arg4[%c0_3, %c0_4] : memref<32x64xf32, #tpu.memory_space<vmem>>, vector<32x64xf32>
    %cst = arith.constant dense<0.000000e+00> : vector<16x64xf32>
    %6 = tpu.matmul %4, %5, %cst {dimension_numbers = #tpu.dot_dimension_numbers<[1], [0], [0], [1], [0, 0, 1, 1], [], []>} : vector<16x32xf32>, vector<32x64xf32>, vector<16x64xf32> -> vector<16x64xf32>
    %7 = vector.extract_strided_slice %6 {offsets = [0, 0], sizes = [16, 16], strides = [1, 1]} : vector<16x64xf32> to vector<16x16xf32>
    %c0_5 = arith.constant 0 : index
    %c0_6 = arith.constant 0 : index
    %8 = vector.load %arg9[%c0_5, %c0_6] : memref<8x128xf32, #tpu.memory_space<vmem>>, vector<8x16xf32>
    %c0_7 = arith.constant 0 : index
    %c64 = arith.constant 64 : index
    %9 = vector.load %arg9[%c0_7, %c64] : memref<8x128xf32, #tpu.memory_space<vmem>>, vector<8x16xf32>
    %cst_8 = arith.constant dense<0.000000e+00> : vector<16x8xf32>
    %10 = tpu.matmul %7, %8, %cst_8 {dimension_numbers = #tpu.dot_dimension_numbers<[1], [1], [0], [0], [0, 0, 1, 0], [], []>} : vector<16x16xf32>, vector<8x16xf32>, vector<16x8xf32> -> vector<16x8xf32>
    %cst_9 = arith.constant dense<0xFF800000> : vector<16xf32>
    %11 = vector.multi_reduction <maximumf>, %10, %cst_9 [1] : vector<16x8xf32> to vector<16xf32>
    %12 = vector.shape_cast %11 : vector<16xf32> to vector<16x1xf32>
    %13 = vector.broadcast %12 : vector<16x1xf32> to vector<16x8xf32>
    %14 = arith.subf %10, %13 : vector<16x8xf32>
    %15 = math.exp %14 : vector<16x8xf32>
    %cst_10 = arith.constant dense<0.000000e+00> : vector<16xf32>
    %16 = vector.multi_reduction <add>, %15, %cst_10 [1] : vector<16x8xf32> to vector<16xf32>
    %17 = vector.shape_cast %16 : vector<16xf32> to vector<16x1xf32>
    %18 = tpu.reciprocal %17 : vector<16x1xf32> -> vector<16x1xf32>
    %19 = vector.broadcast %18 : vector<16x1xf32> to vector<16x8xf32>
    %20 = arith.mulf %15, %19 : vector<16x8xf32>
    %cst_11 = arith.constant dense<0.000000e+00> : vector<16x16xf32>
    %21 = tpu.matmul %20, %9, %cst_11 {dimension_numbers = #tpu.dot_dimension_numbers<[1], [0], [0], [1], [0, 0, 1, 1], [], []>} : vector<16x8xf32>, vector<8x16xf32>, vector<16x16xf32> -> vector<16x16xf32>
    %c0_12 = arith.constant 0 : index
    %c0_13 = arith.constant 0 : index
    %22 = vector.load %arg10[%c0_12, %c0_13] : memref<16x64xf32, #tpu.memory_space<vmem>>, vector<16x16xf32>
    tpu.vector_store %arg10[%c0_12, %c0_13], %21 {strides = array<i32>} : memref<16x64xf32, #tpu.memory_space<vmem>>, vector<16x16xf32>,
    %23 = vector.extract_strided_slice %6 {offsets = [0, 16], sizes = [16, 16], strides = [1, 1]} : vector<16x64xf32> to vector<16x16xf32>
    %c0_14 = arith.constant 0 : index
    %c16 = arith.constant 16 : index
    %24 = vector.load %arg9[%c0_14, %c16] : memref<8x128xf32, #tpu.memory_space<vmem>>, vector<8x16xf32>
    %c0_15 = arith.constant 0 : index
    %c80 = arith.constant 80 : index
    %25 = vector.load %arg9[%c0_15, %c80] : memref<8x128xf32, #tpu.memory_space<vmem>>, vector<8x16xf32>
    %cst_16 = arith.constant dense<0.000000e+00> : vector<16x8xf32>
    %26 = tpu.matmul %23, %24, %cst_16 {dimension_numbers = #tpu.dot_dimension_numbers<[1], [1], [0], [0], [0, 0, 1, 0], [], []>} : vector<16x16xf32>, vector<8x16xf32>, vector<16x8xf32> -> vector<16x8xf32>
    %cst_17 = arith.constant dense<0xFF800000> : vector<16xf32>
    %27 = vector.multi_reduction <maximumf>, %26, %cst_17 [1] : vector<16x8xf32> to vector<16xf32>
    %28 = vector.shape_cast %27 : vector<16xf32> to vector<16x1xf32>
    %29 = vector.broadcast %28 : vector<16x1xf32> to vector<16x8xf32>
    %30 = arith.subf %26, %29 : vector<16x8xf32>
    %31 = math.exp %30 : vector<16x8xf32>
    %cst_18 = arith.constant dense<0.000000e+00> : vector<16xf32>
    %32 = vector.multi_reduction <add>, %31, %cst_18 [1] : vector<16x8xf32> to vector<16xf32>
    %33 = vector.shape_cast %32 : vector<16xf32> to vector<16x1xf32>
    %34 = tpu.reciprocal %33 : vector<16x1xf32> -> vector<16x1xf32>
    %35 = vector.broadcast %34 : vector<16x1xf32> to vector<16x8xf32>
    %36 = arith.mulf %31, %35 : vector<16x8xf32>
    %cst_19 = arith.constant dense<0.000000e+00> : vector<16x16xf32>
    %37 = tpu.matmul %36, %25, %cst_19 {dimension_numbers = #tpu.dot_dimension_numbers<[1], [0], [0], [1], [0, 0, 1, 1], [], []>} : vector<16x8xf32>, vector<8x16xf32>, vector<16x16xf32> -> vector<16x16xf32>
    %c0_20 = arith.constant 0 : index
    %c16_21 = arith.constant 16 : index
    %38 = vector.load %arg10[%c0_20, %c16_21] : memref<16x64xf32, #tpu.memory_space<vmem>>, vector<16x16xf32>
    tpu.vector_store %arg10[%c0_20, %c16_21], %37 {strides = array<i32>} : memref<16x64xf32, #tpu.memory_space<vmem>>, vector<16x16xf32>,
    %39 = vector.extract_strided_slice %6 {offsets = [0, 32], sizes = [16, 16], strides = [1, 1]} : vector<16x64xf32> to vector<16x16xf32>
    %c0_22 = arith.constant 0 : index
    %c32 = arith.constant 32 : index
    %40 = vector.load %arg9[%c0_22, %c32] : memref<8x128xf32, #tpu.memory_space<vmem>>, vector<8x16xf32>
    %c0_23 = arith.constant 0 : index
    %c96 = arith.constant 96 : index
    %41 = vector.load %arg9[%c0_23, %c96] : memref<8x128xf32, #tpu.memory_space<vmem>>, vector<8x16xf32>
    %cst_24 = arith.constant dense<0.000000e+00> : vector<16x8xf32>
    %42 = tpu.matmul %39, %40, %cst_24 {dimension_numbers = #tpu.dot_dimension_numbers<[1], [1], [0], [0], [0, 0, 1, 0], [], []>} : vector<16x16xf32>, vector<8x16xf32>, vector<16x8xf32> -> vector<16x8xf32>
    %cst_25 = arith.constant dense<0xFF800000> : vector<16xf32>
    %43 = vector.multi_reduction <maximumf>, %42, %cst_25 [1] : vector<16x8xf32> to vector<16xf32>
    %44 = vector.shape_cast %43 : vector<16xf32> to vector<16x1xf32>
    %45 = vector.broadcast %44 : vector<16x1xf32> to vector<16x8xf32>
    %46 = arith.subf %42, %45 : vector<16x8xf32>
    %47 = math.exp %46 : vector<16x8xf32>
    %cst_26 = arith.constant dense<0.000000e+00> : vector<16xf32>
    %48 = vector.multi_reduction <add>, %47, %cst_26 [1] : vector<16x8xf32> to vector<16xf32>
    %49 = vector.shape_cast %48 : vector<16xf32> to vector<16x1xf32>
    %50 = tpu.reciprocal %49 : vector<16x1xf32> -> vector<16x1xf32>
    %51 = vector.broadcast %50 : vector<16x1xf32> to vector<16x8xf32>
    %52 = arith.mulf %47, %51 : vector<16x8xf32>
    %cst_27 = arith.constant dense<0.000000e+00> : vector<16x16xf32>
    %53 = tpu.matmul %52, %41, %cst_27 {dimension_numbers = #tpu.dot_dimension_numbers<[1], [0], [0], [1], [0, 0, 1, 1], [], []>} : vector<16x8xf32>, vector<8x16xf32>, vector<16x16xf32> -> vector<16x16xf32>
    %c0_28 = arith.constant 0 : index
    %c32_29 = arith.constant 32 : index
    %54 = vector.load %arg10[%c0_28, %c32_29] : memref<16x64xf32, #tpu.memory_space<vmem>>, vector<16x16xf32>
    tpu.vector_store %arg10[%c0_28, %c32_29], %53 {strides = array<i32>} : memref<16x64xf32, #tpu.memory_space<vmem>>, vector<16x16xf32>,
    %55 = vector.extract_strided_slice %6 {offsets = [0, 48], sizes = [16, 16], strides = [1, 1]} : vector<16x64xf32> to vector<16x16xf32>
    %c0_30 = arith.constant 0 : index
    %c48 = arith.constant 48 : index
    %56 = vector.load %arg9[%c0_30, %c48] : memref<8x128xf32, #tpu.memory_space<vmem>>, vector<8x16xf32>
    %c0_31 = arith.constant 0 : index
    %c112 = arith.constant 112 : index
    %57 = vector.load %arg9[%c0_31, %c112] : memref<8x128xf32, #tpu.memory_space<vmem>>, vector<8x16xf32>
    %cst_32 = arith.constant dense<0.000000e+00> : vector<16x8xf32>
    %58 = tpu.matmul %55, %56, %cst_32 {dimension_numbers = #tpu.dot_dimension_numbers<[1], [1], [0], [0], [0, 0, 1, 0], [], []>} : vector<16x16xf32>, vector<8x16xf32>, vector<16x8xf32> -> vector<16x8xf32>
    %cst_33 = arith.constant dense<0xFF800000> : vector<16xf32>
    %59 = vector.multi_reduction <maximumf>, %58, %cst_33 [1] : vector<16x8xf32> to vector<16xf32>
    %60 = vector.shape_cast %59 : vector<16xf32> to vector<16x1xf32>
    %61 = vector.broadcast %60 : vector<16x1xf32> to vector<16x8xf32>
    %62 = arith.subf %58, %61 : vector<16x8xf32>
    %63 = math.exp %62 : vector<16x8xf32>
    %cst_34 = arith.constant dense<0.000000e+00> : vector<16xf32>
    %64 = vector.multi_reduction <add>, %63, %cst_34 [1] : vector<16x8xf32> to vector<16xf32>
    %65 = vector.shape_cast %64 : vector<16xf32> to vector<16x1xf32>
    %66 = tpu.reciprocal %65 : vector<16x1xf32> -> vector<16x1xf32>
    %67 = vector.broadcast %66 : vector<16x1xf32> to vector<16x8xf32>
    %68 = arith.mulf %63, %67 : vector<16x8xf32>
    %cst_35 = arith.constant dense<0.000000e+00> : vector<16x16xf32>
    %69 = tpu.matmul %68, %57, %cst_35 {dimension_numbers = #tpu.dot_dimension_numbers<[1], [0], [0], [1], [0, 0, 1, 1], [], []>} : vector<16x8xf32>, vector<8x16xf32>, vector<16x16xf32> -> vector<16x16xf32>
    %c0_36 = arith.constant 0 : index
    %c48_37 = arith.constant 48 : index
    %70 = vector.load %arg10[%c0_36, %c48_37] : memref<16x64xf32, #tpu.memory_space<vmem>>, vector<16x16xf32>
    tpu.vector_store %arg10[%c0_36, %c48_37], %69 {strides = array<i32>} : memref<16x64xf32, #tpu.memory_space<vmem>>, vector<16x16xf32>,
    %c0_38 = arith.constant 0 : index
    %c0_39 = arith.constant 0 : index
    %71 = vector.load %arg10[%c0_38, %c0_39] : memref<16x64xf32, #tpu.memory_space<vmem>>, vector<16x64xf32>
    %c0_40 = arith.constant 0 : index
    %c0_41 = arith.constant 0 : index
    %72 = vector.load %arg6[%c0_40, %c0_41] : memref<64x32xf32, #tpu.memory_space<vmem>>, vector<64x32xf32>
    %cst_42 = arith.constant dense<0.000000e+00> : vector<16x32xf32>
    %73 = tpu.matmul %71, %72, %cst_42 {dimension_numbers = #tpu.dot_dimension_numbers<[1], [0], [0], [1], [0, 0, 1, 1], [], []>} : vector<16x64xf32>, vector<64x32xf32>, vector<16x32xf32> -> vector<16x32xf32>
    %c0_43 = arith.constant 0 : index
    %c0_44 = arith.constant 0 : index
    %74 = vector.load %arg7[%c0_43, %c0_44] : memref<1x32xf32, #tpu.memory_space<vmem>>, vector<1x32xf32>
    %75 = vector.broadcast %74 : vector<1x32xf32> to vector<16x32xf32>
    %76 = arith.addf %73, %75 : vector<16x32xf32>
    %c0_45 = arith.constant 0 : index
    %c0_46 = arith.constant 0 : index
    %c0_47 = arith.constant 0 : index
    %77 = vector.load %arg8[%c0_45, %c0_46, %c0_47] : memref<1x16x32xf32, #tpu.memory_space<vmem>>, vector<1x16x32xf32>
    %78 = vector.shape_cast %77 : vector<1x16x32xf32> to vector<16x32xf32>
    %79 = vector.shape_cast %76 : vector<16x32xf32> to vector<1x16x32xf32>
    tpu.vector_store %arg8[%c0_45, %c0_46, %c0_47], %79 {strides = array<i32>} : memref<1x16x32xf32, #tpu.memory_space<vmem>>, vector<1x16x32xf32>,
    return
  }
  func.func @transform_0(%arg0: i32, %arg1: i32) -> (i32, i32, i32) {
    %c0_i32 = arith.constant 0 : i32
    %c0_i32_0 = arith.constant 0 : i32
    return %arg0, %arg1, %c0_i32 : i32, i32, i32
  }
  func.func @transform_1(%arg0: i32, %arg1: i32) -> (i32, i32, i32) {
    %c0_i32 = arith.constant 0 : i32
    %c0_i32_0 = arith.constant 0 : i32
    %c0_i32_1 = arith.constant 0 : i32
    return %arg0, %c0_i32, %c0_i32_0 : i32, i32, i32
  }
  func.func @transform_2(%arg0: i32, %arg1: i32) -> (i32, i32) {
    %c0_i32 = arith.constant 0 : i32
    %c0_i32_0 = arith.constant 0 : i32
    %c0_i32_1 = arith.constant 0 : i32
    return %c0_i32, %c0_i32_0 : i32, i32
  }
  func.func @transform_3(%arg0: i32, %arg1: i32) -> (i32, i32) {
    %c0_i32 = arith.constant 0 : i32
    %c0_i32_0 = arith.constant 0 : i32
    %c0_i32_1 = arith.constant 0 : i32
    return %c0_i32, %c0_i32_0 : i32, i32
  }
  func.func @transform_4(%arg0: i32, %arg1: i32) -> (i32, i32) {
    %c0_i32 = arith.constant 0 : i32
    %c0_i32_0 = arith.constant 0 : i32
    %c0_i32_1 = arith.constant 0 : i32
    return %c0_i32, %c0_i32_0 : i32, i32
  }
  func.func @transform_5(%arg0: i32, %arg1: i32) -> (i32, i32) {
    %c0_i32 = arith.constant 0 : i32
    %c0_i32_0 = arith.constant 0 : i32
    %c0_i32_1 = arith.constant 0 : i32
    return %c0_i32, %c0_i32_0 : i32, i32
  }
  func.func @transform_6(%arg0: i32, %arg1: i32) -> (i32, i32, i32) {
    %c0_i32 = arith.constant 0 : i32
    %c0_i32_0 = arith.constant 0 : i32
    return %arg0, %arg1, %c0_i32 : i32, i32, i32
  }
}

</mosaic_0001>

<llo_original>
// kernel: tpu_custom_call.1
$region0: #{tpu_custom_call.1}
  #allocation0 [shape = 'u32[]', space=smem, size = 0x4, offset = 0x4, fixed_abs, tag = 'smem constant byte address 0x4 - core index']
  #allocation1 [shape = 'u32[72,128]{1,0:T(1,128)}', space=vmem, size = 0x9000, scoped, tag = 'internal scratch']
  #allocation2 [shape = 'f32[8,128]{1,0:T(8,128)}', space=vmem, size = 0x1000, scoped, tag = 'scratch operand']
  #allocation3 [shape = 'f32[16,64]{1,0:T(8,128)}', space=vmem, size = 0x2000, scoped, tag = 'scratch operand']
  %s0 = inlined_call_operand.vmem [shape: f32[2,16,32], index: 0, kind: input, shape index: {}]
  %s1 = inlined_call_operand.hbm [shape: f32[2,8,24], index: 1, kind: input, shape index: {}]
  %s2 = inlined_call_operand.vmem [shape: f32[32,64], index: 2, kind: input, shape index: {}]
  %s3 = inlined_call_operand.vmem [shape: f32[24,128], index: 3, kind: input, shape index: {}]
  %s4 = inlined_call_operand.vmem [shape: f32[64,32], index: 4, kind: input, shape index: {}]
  %s5 = inlined_call_operand.vmem [shape: f32[1,32], index: 5, kind: input, shape index: {}]
  %s6 = inlined_call_operand.hbm [shape: f32[2,16,32], index: 6, kind: output, shape index: {}]
  %s7 = sld [smem:[#allocation0]]
  $region65: #{tpu_custom_call.1} parent=0
    _
  %s9 = ssub.s32 1, %s7
  %s10 = scalar_select 0, %s9, %s7
  $region1: #{tpu_custom_call.1} parent=0
    #allocation4 [shape = 'u8[4096]{0}', space=vmem, size = 0x1000, scoped, tag = 'input window, operand 1, single buffered']
    #allocation5 [shape = 's32[2]{0}', space=sflag, size = 0x8, scoped, tag = 'scoped memory for tpu_custom_call.1']
    #allocation6 [shape = 's32[2]{0}', space=sflag, size = 0x8, scoped, tag = 'scoped memory for tpu_custom_call.1']
    #allocation7 [shape = 'u8[16384]{0}', space=vmem, size = 0x4000, scoped, tag = 'output window, operand 0']
    %11 = vsyncpa [#allocation5], 0
    %12 = vsyncpa [#allocation6], 0
    %s13 = scalar_lea.sflag [#allocation6], 1
    %14 = vsyncpa %s13, 0
    loop: start=0, step=1, limit=4
    $region2: #{tpu_custom_call.1} parent=1 // loop_pre_header
      _
    $region3: #{tpu_custom_call.1} parent=1 // loop_header
      %s16 = sphi 0, %s20
      %p17 = scmp.ge.s32.totalorder %s16, 4
      %s23 = sphi 0, %s35
      %s24 = sphi 0, %s31
      %s25 = sphi 0, %s23
      %s26 = sphi 0, %s24
      %s27 = sphi 0, %s25
      %s28 = sphi 0, %s26
      %s40 = sphi 0, %s42
      %s43 = sphi 0, %s40
      %s44 = sphi 0, %s43
      %s60 = sphi 0, %s44
      %s66 = sphi 0, %s68
      %s69 = sphi 0, %s66
      %s70 = sphi 0, %s69
      %s86 = sphi 0, %s70
      %s90 = sphi 0, %s90
      %s92 = sphi 0, %s90
      %s93 = sphi 0, %s92
      %s107 = sphi 0, %s93
      %s111 = sphi 0, %s111
      %s113 = sphi 0, %s111
      %s114 = sphi 0, %s113
      %s128 = sphi 0, %s114
      %s132 = sphi 0, %s132
      %s134 = sphi 0, %s132
      %s135 = sphi 0, %s134
      %s149 = sphi 0, %s135
      %s153 = sphi 0, %s153
      %s155 = sphi 0, %s153
      %s156 = sphi 0, %s155
      %s170 = sphi 0, %s156
      %s178 = sphi 0, %s180
      %s181 = sphi 0, %s178
      %s182 = sphi 0, %s181
      %s198 = sphi 0, %s182
    $region4: #{tpu_custom_call.1} parent=1 // loop_header_branch
      %19 = sbr.rel (%p17) target = $region8
    $region5: #{tpu_custom_call.1} parent=1 // loop_body
      %s21 = ssub.s32 %s16, 1
      %s22 = ssub.s32 %s16, 2
      %s29 = sadd.s32 1, %s24
      %p30 = scmp.ge.s32.totalorder %s29, 1
      %s31 = scalar_select %p30, 0, %s29
      %s32 = sadd.s32 1, %s23
      %s33 = scalar_select %p30, %s32, %s23
      %p34 = scmp.ge.s32.totalorder %s33, 2
      %s35 = scalar_select %p34, 0, %s33
      %s36 = ssub.s32 %s23, %s35
      %s37 = ssub.s32 %s24, %s31
      %s38 = sor.u32 %s36, %s37
      %p39 = scmp.eq.s32.totalorder %s38, 0
      %s41 = sadd.s32 %s40, 1
      %s42 = scalar_select %p39, %s40, %s41
      %p45 = pneg %p39
      %p46 = scmp.eq.s32.totalorder %s16, 1
      %p47 = por %p45, %p46
      %p48 = scmp.ne.s32.totalorder %s40, %s43
      %p49 = scmp.eq.s32.totalorder %s16, 0
      %p50 = por %p48, %p49
      %p51 = scmp.ne.s32.totalorder %s40, %s43
      %p52 = scmp.eq.s32.totalorder %s21, 1
      %p53 = por %p51, %p52
      %p54 = scmp.ne.s32.totalorder %s43, %s44
      %p55 = scmp.eq.s32.totalorder %s21, 0
      %p56 = por %p54, %p55
      %p57 = scmp.ne.s32.totalorder %s43, %s44
      %p58 = scmp.eq.s32.totalorder %s22, 1
      %p59 = por %p57, %p58
      %p61 = scmp.ne.s32.totalorder %s44, %s60
      %p62 = scmp.eq.s32.totalorder %s22, 0
      %p63 = por %p61, %p62
      %s64 = ssub.s32 %s23, %s35
      %p65 = scmp.eq.s32.totalorder %s64, 0
      %s67 = sadd.s32 %s66, 1
      %s68 = scalar_select %p65, %s66, %s67
      %p71 = pneg %p65
      %p72 = scmp.eq.s32.totalorder %s16, 1
      %p73 = por %p71, %p72
      %p74 = scmp.ne.s32.totalorder %s66, %s69
      %p75 = scmp.eq.s32.totalorder %s16, 0
      %p76 = por %p74, %p75
      %p77 = scmp.ne.s32.totalorder %s66, %s69
      %p78 = scmp.eq.s32.totalorder %s21, 1
      %p79 = por %p77, %p78
      %p80 = scmp.ne.s32.totalorder %s69, %s70
      %p81 = scmp.eq.s32.totalorder %s21, 0
      %p82 = por %p80, %p81
      %p83 = scmp.ne.s32.totalorder %s69, %s70
      %p84 = scmp.eq.s32.totalorder %s22, 1
      %p85 = por %p83, %p84
      %p87 = scmp.ne.s32.totalorder %s70, %s86
      %p88 = scmp.eq.s32.totalorder %s22, 0
      %p89 = por %p87, %p88
      %s91 = sadd.s32 %s90, 1
      %p94 = scmp.eq.s32.totalorder %s16, 1
      %p95 = scmp.ne.s32.totalorder %s90, %s92
      %p96 = scmp.eq.s32.totalorder %s16, 0
      %p97 = por %p95, %p96
      %p98 = scmp.ne.s32.totalorder %s90, %s92
      %p99 = scmp.eq.s32.totalorder %s21, 1
      %p100 = por %p98, %p99
      %p101 = scmp.ne.s32.totalorder %s92, %s93
      %p102 = scmp.eq.s32.totalorder %s21, 0
      %p103 = por %p101, %p102
      %p104 = scmp.ne.s32.totalorder %s92, %s93
      %p105 = scmp.eq.s32.totalorder %s22, 1
      %p106 = por %p104, %p105
      %p108 = scmp.ne.s32.totalorder %s93, %s107
      %p109 = scmp.eq.s32.totalorder %s22, 0
      %p110 = por %p108, %p109
      %s112 = sadd.s32 %s111, 1
      %p115 = scmp.eq.s32.totalorder %s16, 1
      %p116 = scmp.ne.s32.totalorder %s111, %s113
      %p117 = scmp.eq.s32.totalorder %s16, 0
      %p118 = por %p116, %p117
      %p119 = scmp.ne.s32.totalorder %s111, %s113
      %p120 = scmp.eq.s32.totalorder %s21, 1
      %p121 = por %p119, %p120
      %p122 = scmp.ne.s32.totalorder %s113, %s114
      %p123 = scmp.eq.s32.totalorder %s21, 0
      %p124 = por %p122, %p123
      %p125 = scmp.ne.s32.totalorder %s113, %s114
      %p126 = scmp.eq.s32.totalorder %s22, 1
      %p127 = por %p125, %p126
      %p129 = scmp.ne.s32.totalorder %s114, %s128
      %p130 = scmp.eq.s32.totalorder %s22, 0
      %p131 = por %p129, %p130
      %s133 = sadd.s32 %s132, 1
      %p136 = scmp.eq.s32.totalorder %s16, 1
      %p137 = scmp.ne.s32.totalorder %s132, %s134
      %p138 = scmp.eq.s32.totalorder %s16, 0
      %p139 = por %p137, %p138
      %p140 = scmp.ne.s32.totalorder %s132, %s134
      %p141 = scmp.eq.s32.totalorder %s21, 1
      %p142 = por %p140, %p141
      %p143 = scmp.ne.s32.totalorder %s134, %s135
      %p144 = scmp.eq.s32.totalorder %s21, 0
      %p145 = por %p143, %p144
      %p146 = scmp.ne.s32.totalorder %s134, %s135
      %p147 = scmp.eq.s32.totalorder %s22, 1
      %p148 = por %p146, %p147
      %p150 = scmp.ne.s32.totalorder %s135, %s149
      %p151 = scmp.eq.s32.totalorder %s22, 0
      %p152 = por %p150, %p151
      %s154 = sadd.s32 %s153, 1
      %p157 = scmp.eq.s32.totalorder %s16, 1
      %p158 = scmp.ne.s32.totalorder %s153, %s155
      %p159 = scmp.eq.s32.totalorder %s16, 0
      %p160 = por %p158, %p159
      %p161 = scmp.ne.s32.totalorder %s153, %s155
      %p162 = scmp.eq.s32.totalorder %s21, 1
      %p163 = por %p161, %p162
      %p164 = scmp.ne.s32.totalorder %s155, %s156
      %p165 = scmp.eq.s32.totalorder %s21, 0
      %p166 = por %p164, %p165
      %p167 = scmp.ne.s32.totalorder %s155, %s156
      %p168 = scmp.eq.s32.totalorder %s22, 1
      %p169 = por %p167, %p168
      %p171 = scmp.ne.s32.totalorder %s156, %s170
      %p172 = scmp.eq.s32.totalorder %s22, 0
      %p173 = por %p171, %p172
      %s174 = ssub.s32 %s23, %s35
      %s175 = ssub.s32 %s24, %s31
      %s176 = sor.u32 %s174, %s175
      %p177 = scmp.eq.s32.totalorder %s176, 0
      %s179 = sadd.s32 %s178, 1
      %s180 = scalar_select %p177, %s178, %s179
      %p183 = pneg %p177
      %p184 = scmp.eq.s32.totalorder %s16, 1
      %p185 = por %p183, %p184
      %p186 = scmp.ne.s32.totalorder %s178, %s181
      %p187 = scmp.eq.s32.totalorder %s16, 0
      %p188 = por %p186, %p187
      %p189 = scmp.ne.s32.totalorder %s178, %s181
      %p190 = scmp.eq.s32.totalorder %s21, 1
      %p191 = por %p189, %p190
      %p192 = scmp.ne.s32.totalorder %s181, %s182
      %p193 = scmp.eq.s32.totalorder %s21, 0
      %p194 = por %p192, %p193
      %p195 = scmp.ne.s32.totalorder %s181, %s182
      %p196 = scmp.eq.s32.totalorder %s22, 1
      %p197 = por %p195, %p196
      %p199 = scmp.ne.s32.totalorder %s182, %s198
      %p200 = scmp.eq.s32.totalorder %s22, 0
      %p201 = por %p199, %p200
      %p202 = scmp.le.s32.totalorder 1, %s16
      %p203 = scmp.lt.s32.totalorder %s16, 3
      %p204 = pnand %p202, %p203
      %p205 = pneg %p204
      // Predicated region
      $region9: #{tpu_custom_call.1} parent=5 // pred_check
        _
      $region10: #{tpu_custom_call.1} parent=5 // pred_check_branch
        %207 = sbr.rel (%p204) target = $region12
      $region11: #{tpu_custom_call.1} parent=5 // pred_region
        %s208 = ssub.s32 %s16, 1
        // Predicated region
        $region13: #{tpu_custom_call.1} parent=11 // pred_check
          %p209 = pneg %p82
        $region14: #{tpu_custom_call.1} parent=11 // pred_check_branch
          %211 = sbr.rel (%p209) target = $region16
        $region15: #{tpu_custom_call.1} parent=11 // pred_region
          %213 = vsyncadd [#allocation5], 0
          %s214 = smul.addr %s25, 8
          %s215 = scalar_lea.hbm %s1, %s214
          %s217 = sshll.u32 %s215, 4
          %s218 = int_to_ptr.hbm [resolvable:$true] %s217
          %s219 = sshll.u32 [#allocation4], 4
          %s220 = int_to_ptr.vmem [resolvable:$true] %s219
          %222 = dma.hbm_to_vmem [thread:$0]  %s218, 128, %s220, [#allocation5]
        $region16: #{tpu_custom_call.1} parent=11 // pred_fallthru
          _
        // Predicated region
        $region17: #{tpu_custom_call.1} parent=11 // pred_check
          %p223 = pneg %p103
        $region18: #{tpu_custom_call.1} parent=11 // pred_check_branch
          %225 = sbr.rel (%p223) target = $region20
        $region19: #{tpu_custom_call.1} parent=11 // pred_region
          _
        $region20: #{tpu_custom_call.1} parent=11 // pred_fallthru
          _
        // Predicated region
        $region21: #{tpu_custom_call.1} parent=11 // pred_check
          %p226 = pneg %p124
        $region22: #{tpu_custom_call.1} parent=11 // pred_check_branch
          %228 = sbr.rel (%p226) target = $region24
        $region23: #{tpu_custom_call.1} parent=11 // pred_region
          _
        $region24: #{tpu_custom_call.1} parent=11 // pred_fallthru
          _
        // Predicated region
        $region25: #{tpu_custom_call.1} parent=11 // pred_check
          %p229 = pneg %p145
        $region26: #{tpu_custom_call.1} parent=11 // pred_check_branch
          %231 = sbr.rel (%p229) target = $region28
        $region27: #{tpu_custom_call.1} parent=11 // pred_region
          _
        $region28: #{tpu_custom_call.1} parent=11 // pred_fallthru
          _
        // Predicated region
        $region29: #{tpu_custom_call.1} parent=11 // pred_check
          %p232 = pneg %p166
        $region30: #{tpu_custom_call.1} parent=11 // pred_check_branch
          %234 = sbr.rel (%p232) target = $region32
        $region31: #{tpu_custom_call.1} parent=11 // pred_region
          _
        $region32: #{tpu_custom_call.1} parent=11 // pred_fallthru
          _
      $region12: #{tpu_custom_call.1} parent=5 // pred_fallthru
        _
      %p235 = scmp.lt.s32.totalorder %s16, 2
      // Predicated region
      $region33: #{tpu_custom_call.1} parent=5 // pred_check
        %p236 = pneg %p235
      $region34: #{tpu_custom_call.1} parent=5 // pred_check_branch
        %238 = sbr.rel (%p236) target = $region36
      $region35: #{tpu_custom_call.1} parent=5 // pred_region
        // Predicated region
        $region37: #{tpu_custom_call.1} parent=35 // pred_check
          %p239 = pneg %p50
        $region38: #{tpu_custom_call.1} parent=35 // pred_check_branch
          %241 = sbr.rel (%p239) target = $region40
        $region39: #{tpu_custom_call.1} parent=35 // pred_region
          %s242 = smul.u32 2, %s24
          %p243 = scmp.lt.s32.totalorder %s23, 1
          %s244 = scalar_select %p243, %s23, 1
          %p245 = scmp.lt.s32.totalorder %s242, 1
          %s246 = scalar_select %p245, %s242, 1
          %s247 = smul.addr %s244, 2
          %s248 = sadd.s32 %s246, %s247
          %s249 = smul.addr %s248, 8
          %s250 = scalar_lea.vmem %s0, %s249
          %s251 = smul.u32 2, %s24
        $region40: #{tpu_custom_call.1} parent=35 // pred_fallthru
          _
      $region36: #{tpu_custom_call.1} parent=5 // pred_fallthru
        _
      %p252 = scmp.le.s32.totalorder 1, %s16
      %p253 = scmp.lt.s32.totalorder %s16, 3
      %p254 = pnand %p252, %p253
      %p255 = pneg %p254
      // Predicated region
      $region41: #{tpu_custom_call.1} parent=5 // pred_check
        _
      $region42: #{tpu_custom_call.1} parent=5 // pred_check_branch
        %257 = sbr.rel (%p254) target = $region44
      $region43: #{tpu_custom_call.1} parent=5 // pred_region
        %s258 = ssub.s32 %s16, 1
        // Predicated region
        $region45: #{tpu_custom_call.1} parent=43 // pred_check
          %p259 = pneg %p82
        $region46: #{tpu_custom_call.1} parent=43 // pred_check_branch
          %261 = sbr.rel (%p259) target = $region48
        $region47: #{tpu_custom_call.1} parent=43 // pred_region
          %263 = dma.done [#allocation5], 128
        $region48: #{tpu_custom_call.1} parent=43 // pred_fallthru
          _
        %s264 = smul.u32 2, %s26
        %p265 = scmp.lt.s32.totalorder %s25, 1
        %s266 = scalar_select %p265, %s25, 1
        %p267 = scmp.lt.s32.totalorder %s264, 1
        %s268 = scalar_select %p267, %s264, 1
        %s269 = smul.addr %s266, 2
        %s270 = sadd.s32 %s268, %s269
        %s271 = smul.addr %s270, 8
        %s272 = scalar_lea.vmem %s0, %s271
        %p273 = pneg %p56
        %p274 = pneg %p53
        %p275 = pneg %p82
        %p276 = pneg %p79
        %p277 = pneg %p103
        %p278 = pneg %p100
        %p279 = pneg %p124
        %p280 = pneg %p121
        %p281 = pneg %p145
        %p282 = pneg %p142
        %p283 = pneg %p166
        %p284 = pneg %p163
        %p285 = pneg %p194
        %p286 = pneg %p191
        %s287 = sand.u32 %s181, 1
        %s288 = scalar_lea.sflag [#allocation6], %s287
        %s289 = sand.u32 %s181, 1
        %s290 = smul.addr %s289, 16
        %s291 = scalar_lea.vmem [#allocation7], %s290
        %s292 = smul.u32 2, %s26
        %p293 = scmp.lt.s32.totalorder %s25, 1
        %s294 = scalar_select %p293, %s25, 1
        %p295 = scmp.lt.s32.totalorder %s292, 1
        %s296 = scalar_select %p295, %s292, 1
        %s297 = smul.addr %s294, 2
        %s298 = sadd.s32 %s296, %s297
        %s299 = smul.addr %s298, 8
        %s300 = scalar_lea.vmem %s0, %s299
        %s301 = smul.u32 2, %s26
        %s302 = smul.u32 2, %s26
        %p303 = scmp.eq.s32.totalorder %s26, 0
        // Predicated region
        $region49: #{tpu_custom_call.1} parent=43 // pred_check
          %p304 = pneg %p303
        $region50: #{tpu_custom_call.1} parent=43 // pred_check_branch
          %306 = sbr.rel (%p304) target = $region52
        $region51: #{tpu_custom_call.1} parent=43 // pred_region
          %v307 = vld [vmem:[#allocation4] sm:$0xff]
          %v308 = vld [vmem:[%s3] sm:$0xff]
          %v309 = vld [vmem:[%s3 + $0x8] sm:$0xff]
          %v310 = vld [vmem:[%s3 + $0x10] sm:$0xff]
          %vm311 = vcmask 195584
          %v313 = vsel %vm311, %v307, 0
          %315 = vmatpush.msra.mxu0 0.0
          %316 = vmatpush.msra.mxu0 0.0
          %317 = vmatpush.msra.mxu0 0.0
          %318 = vmatpush.msra.mxu0 0.0
          %319 = vmatpush.msra.mxu0 0.0
          %320 = vmatpush.msra.mxu0 0.0
          %321 = vmatpush.msra.mxu0 0.0
          %322 = vmatpush.msra.mxu0 0.0
          %323 = vmatpush.msra.mxu0 0.0
          %324 = vmatpush.msra.mxu0 0.0
          %325 = vmatpush.msra.mxu0 0.0
          %326 = vmatpush.msra.mxu0 0.0
          %327 = vmatpush.msra.mxu0 0.0
          %328 = vmatpush.msra.mxu0 %v310
          %329 = vmatpush.msra.mxu0 %v309
          %330 = vmatpush.msra.mxu0 %v308
          %331 = vmatmul.f32.gmra.mxu0 %v313
          %v332 = vpop.f32.mrf.mxu0
          %v333 = vadd.f32 0.0, %v332
          %334 = vdwg.mxu0
          %335 = vst [vmem:[#allocation2] sm:$0xff] %v333
        $region52: #{tpu_custom_call.1} parent=43 // pred_fallthru
          _
        %v336 = vld [vmem:[%s300] sm:$0xff]
        %v337 = vld [vmem:[%s300 + $0x8] sm:$0xff]
        %v338 = vld [vmem:[%s2] sm:$0xff]
        %v339 = vld [vmem:[%s2 + $0x8] sm:$0xff]
        %v340 = vld [vmem:[%s2 + $0x10] sm:$0xff]
        %v341 = vld [vmem:[%s2 + $0x18] sm:$0xff]
        %vm342 = vcmask 261120
        %v344 = vsel %vm342, %v336, 0
        %v347 = vsel %vm342, %v337, 0
        %349 = vmatpush.msra.mxu0 0.0
        %350 = vmatpush.msra.mxu0 0.0
        %351 = vmatpush.msra.mxu0 0.0
        %352 = vmatpush.msra.mxu0 0.0
        %353 = vmatpush.msra.mxu0 0.0
        %354 = vmatpush.msra.mxu0 0.0
        %355 = vmatpush.msra.mxu0 0.0
        %356 = vmatpush.msra.mxu0 0.0
        %357 = vmatpush.msra.mxu0 0.0
        %358 = vmatpush.msra.mxu0 0.0
        %359 = vmatpush.msra.mxu0 0.0
        %360 = vmatpush.msra.mxu0 0.0
        %361 = vmatpush.msra.mxu0 %v341
        %362 = vmatpush.msra.mxu0 %v340
        %363 = vmatpush.msra.mxu0 %v339
        %364 = vmatpush.msra.mxu0 %v338
        %365 = vmatmul.f32.gmra.mxu0 %v344
        %v366 = vpop.f32.mrf.mxu0
        %v367 = vadd.f32 0.0, %v366
        %368 = vmatmul.f32.gmra.mxu0 %v347
        %v369 = vpop.f32.mrf.mxu0
        %v370 = vadd.f32 0.0, %v369
        %371 = vdwg.mxu0
        %v372 = vld [vmem:[#allocation2] sm:$0xff]
        %vm373 = vcmask 130048
        %v375 = vsel %vm373, %v367, 0
        %v378 = vsel %vm373, %v370, 0
        %v381 = vsel %vm373, %v372, 0
        %383 = vmatpush.xpose.msra.mxu0 0.0
        %384 = vmatpush.xpose.msra.mxu0 0.0
        %385 = vmatpush.xpose.msra.mxu0 0.0
        %386 = vmatpush.xpose.msra.mxu0 0.0
        %387 = vmatpush.xpose.msra.mxu0 0.0
        %388 = vmatpush.xpose.msra.mxu0 0.0
        %389 = vmatpush.xpose.msra.mxu0 0.0
        %390 = vmatpush.xpose.msra.mxu0 0.0
        %391 = vmatpush.xpose.msra.mxu0 0.0
        %392 = vmatpush.xpose.msra.mxu0 0.0
        %393 = vmatpush.xpose.msra.mxu0 0.0
        %394 = vmatpush.xpose.msra.mxu0 0.0
        %395 = vmatpush.xpose.msra.mxu0 0.0
        %396 = vmatpush.xpose.msra.mxu0 0.0
        %397 = vmatpush.xpose.msra.mxu0 0.0
        %398 = vmatpush.xpose.msra.mxu0 %v381
        %399 = vmatmul.f32.gmra.mxu0 %v375
        %v400 = vpop.f32.mrf.mxu0
        %v401 = vadd.f32 0.0, %v400
        %402 = vmatmul.f32.gmra.mxu0 %v378
        %v403 = vpop.f32.mrf.mxu0
        %v404 = vadd.f32 0.0, %v403
        %405 = vdwg.mxu0
        %vm406 = vcmask 64512
        %v407 = vsel %vm406, %v401, -inf
        %408 = vmax.xlane.f32.xlu0 %v407
        %v409 = vpop.xlane.xlu0 %408
        %v410 = vsel %vm406, %v404, -inf
        %411 = vmax.xlane.f32.xlu0 %v410
        %v412 = vpop.xlane.xlu0 %411
        %v413 = vsub.f32 %v401, %v409
        %v414 = vsub.f32 %v404, %v412
        %v415 = vmul.f32 %v413, 1.442695
        %v416 = vpow.pop %v415
        %v417 = vmul.f32 %v414, 1.442695
        %v418 = vpow.pop %v417
        %v419 = vsel %vm406, %v416, 0.0
        %420 = vadd.xlane.f32.xlu0 %v419
        %v421 = vpop.xlane.xlu0 %420
        %v422 = vsel %vm406, %v418, 0.0
        %423 = vadd.xlane.f32.xlu0 %v422
        %v424 = vpop.xlane.xlu0 %423
        %v425 = vrcp.pop %v421
        %v426 = vmul.f32 %v421, %v425
        %v427 = vsub.f32 1.0, %v426
        %v428 = vmul.f32 %v425, %v427
        %v429 = vadd.f32 %v425, %v428
        %vm430 = vweird.f32 %v421
        %vm431 = vweird.f32 %v425
        %vm432 = vmor %vm430, %vm431
        %v433 = vsel %vm432, %v425, %v429
        %v434 = vand.u32 2147483647, %v421
        %vm435 = vcmp.eq.f32.partialorder %v434, 8.507059e+37
        %v436 = vand.u32 %v421, 2147483648
        %v437 = vor.u32 1.1754944e-38, %v436
        %v438 = vsel %vm435, %v437, %v433
        %v439 = vrcp.pop %v424
        %v440 = vmul.f32 %v424, %v439
        %v441 = vsub.f32 1.0, %v440
        %v442 = vmul.f32 %v439, %v441
        %v443 = vadd.f32 %v439, %v442
        %vm444 = vweird.f32 %v424
        %vm445 = vweird.f32 %v439
        %vm446 = vmor %vm444, %vm445
        %v447 = vsel %vm446, %v439, %v443
        %v448 = vand.u32 2147483647, %v424
        %vm449 = vcmp.eq.f32.partialorder %v448, 8.507059e+37
        %v450 = vand.u32 %v424, 2147483648
        %v451 = vor.u32 1.1754944e-38, %v450
        %v452 = vsel %vm449, %v451, %v447
        %v453 = vmul.f32 %v416, %v438
        %v454 = vmul.f32 %v418, %v452
        %455 = vrot.lane.b32.xlu0 %v372, 64
        %v456 = vpop.permute.xlu0 %455
        %v459 = vsel %vm406, %v453, 0
        %v462 = vsel %vm406, %v454, 0
        %464 = vmatpush.msra.mxu0 0.0
        %465 = vmatpush.msra.mxu0 0.0
        %466 = vmatpush.msra.mxu0 0.0
        %467 = vmatpush.msra.mxu0 0.0
        %468 = vmatpush.msra.mxu0 0.0
        %469 = vmatpush.msra.mxu0 0.0
        %470 = vmatpush.msra.mxu0 0.0
        %471 = vmatpush.msra.mxu0 0.0
        %472 = vmatpush.msra.mxu0 0.0
        %473 = vmatpush.msra.mxu0 0.0
        %474 = vmatpush.msra.mxu0 0.0
        %475 = vmatpush.msra.mxu0 0.0
        %476 = vmatpush.msra.mxu0 0.0
        %477 = vmatpush.msra.mxu0 0.0
        %478 = vmatpush.msra.mxu0 0.0
        %479 = vmatpush.msra.mxu0 %v456
        %480 = vmatmul.f32.gmra.mxu0 %v459
        %v481 = vpop.f32.mrf.mxu0
        %v482 = vadd.f32 0.0, %v481
        %483 = vmatmul.f32.gmra.mxu0 %v462
        %v484 = vpop.f32.mrf.mxu0
        %v485 = vadd.f32 0.0, %v484
        %486 = vdwg.mxu0
        %487 = vst.msk [vmem:[#allocation3] sm:$0xff] %vm373, %v482
        %488 = vst.msk [vmem:[#allocation3 + $0x8] sm:$0xff] %vm373, %v485
        %v489 = vld [vmem:[#allocation2] sm:$0xff]
        %490 = vrot.lane.b32.xlu0 %v367, 112
        %v491 = vpop.permute.xlu0 %490
        %492 = vrot.lane.b32.xlu0 %v370, 112
        %v493 = vpop.permute.xlu0 %492
        %495 = vrot.lane.b32.xlu0 %v489, 112
        %v496 = vpop.permute.xlu0 %495
        %v497 = vsel %vm373, %v491, 0
        %v499 = vsel %vm373, %v493, 0
        %v501 = vsel %vm373, %v496, 0
        %503 = vmatpush.xpose.msra.mxu0 0.0
        %504 = vmatpush.xpose.msra.mxu0 0.0
        %505 = vmatpush.xpose.msra.mxu0 0.0
        %506 = vmatpush.xpose.msra.mxu0 0.0
        %507 = vmatpush.xpose.msra.mxu0 0.0
        %508 = vmatpush.xpose.msra.mxu0 0.0
        %509 = vmatpush.xpose.msra.mxu0 0.0
        %510 = vmatpush.xpose.msra.mxu0 0.0
        %511 = vmatpush.xpose.msra.mxu0 0.0
        %512 = vmatpush.xpose.msra.mxu0 0.0
        %513 = vmatpush.xpose.msra.mxu0 0.0
        %514 = vmatpush.xpose.msra.mxu0 0.0
        %515 = vmatpush.xpose.msra.mxu0 0.0
        %516 = vmatpush.xpose.msra.mxu0 0.0
        %517 = vmatpush.xpose.msra.mxu0 0.0
        %518 = vmatpush.xpose.msra.mxu0 %v501
        %519 = vmatmul.f32.gmra.mxu0 %v497
        %v520 = vpop.f32.mrf.mxu0
        %v521 = vadd.f32 0.0, %v520
        %522 = vmatmul.f32.gmra.mxu0 %v499
        %v523 = vpop.f32.mrf.mxu0
        %v524 = vadd.f32 0.0, %v523
        %525 = vdwg.mxu0
        %v526 = vsel %vm406, %v521, -inf
        %527 = vmax.xlane.f32.xlu0 %v526
        %v528 = vpop.xlane.xlu0 %527
        %v529 = vsel %vm406, %v524, -inf
        %530 = vmax.xlane.f32.xlu0 %v529
        %v531 = vpop.xlane.xlu0 %530
        %v532 = vsub.f32 %v521, %v528
        %v533 = vsub.f32 %v524, %v531
        %v534 = vmul.f32 %v532, 1.442695
        %v535 = vpow.pop %v534
        %v536 = vmul.f32 %v533, 1.442695
        %v537 = vpow.pop %v536
        %v538 = vsel %vm406, %v535, 0.0
        %539 = vadd.xlane.f32.xlu0 %v538
        %v540 = vpop.xlane.xlu0 %539
        %v541 = vsel %vm406, %v537, 0.0
        %542 = vadd.xlane.f32.xlu0 %v541
        %v543 = vpop.xlane.xlu0 %542
        %v544 = vrcp.pop %v540
        %v545 = vmul.f32 %v540, %v544
        %v546 = vsub.f32 1.0, %v545
        %v547 = vmul.f32 %v544, %v546
        %v548 = vadd.f32 %v544, %v547
        %vm549 = vweird.f32 %v540
        %vm550 = vweird.f32 %v544
        %vm551 = vmor %vm549, %vm550
        %v552 = vsel %vm551, %v544, %v548
        %v553 = vand.u32 2147483647, %v540
        %vm554 = vcmp.eq.f32.partialorder %v553, 8.507059e+37
        %v555 = vand.u32 %v540, 2147483648
        %v556 = vor.u32 1.1754944e-38, %v555
        %v557 = vsel %vm554, %v556, %v552
        %v558 = vrcp.pop %v543
        %v559 = vmul.f32 %v543, %v558
        %v560 = vsub.f32 1.0, %v559
        %v561 = vmul.f32 %v558, %v560
        %v562 = vadd.f32 %v558, %v561
        %vm563 = vweird.f32 %v543
        %vm564 = vweird.f32 %v558
        %vm565 = vmor %vm563, %vm564
        %v566 = vsel %vm565, %v558, %v562
        %v567 = vand.u32 2147483647, %v543
        %vm568 = vcmp.eq.f32.partialorder %v567, 8.507059e+37
        %v569 = vand.u32 %v543, 2147483648
        %v570 = vor.u32 1.1754944e-38, %v569
        %v571 = vsel %vm568, %v570, %v566
        %v572 = vmul.f32 %v535, %v557
        %v573 = vmul.f32 %v537, %v571
        %574 = vrot.lane.b32.xlu0 %v489, 48
        %v575 = vpop.permute.xlu0 %574
        %v578 = vsel %vm406, %v572, 0
        %v581 = vsel %vm406, %v573, 0
        %583 = vmatpush.msra.mxu0 0.0
        %584 = vmatpush.msra.mxu0 0.0
        %585 = vmatpush.msra.mxu0 0.0
        %586 = vmatpush.msra.mxu0 0.0
        %587 = vmatpush.msra.mxu0 0.0
        %588 = vmatpush.msra.mxu0 0.0
        %589 = vmatpush.msra.mxu0 0.0
        %590 = vmatpush.msra.mxu0 0.0
        %591 = vmatpush.msra.mxu0 0.0
        %592 = vmatpush.msra.mxu0 0.0
        %593 = vmatpush.msra.mxu0 0.0
        %594 = vmatpush.msra.mxu0 0.0
        %595 = vmatpush.msra.mxu0 0.0
        %596 = vmatpush.msra.mxu0 0.0
        %597 = vmatpush.msra.mxu0 0.0
        %598 = vmatpush.msra.mxu0 %v575
        %599 = vmatmul.f32.gmra.mxu0 %v578
        %v600 = vpop.f32.mrf.mxu0
        %v601 = vadd.f32 0.0, %v600
        %602 = vmatmul.f32.gmra.mxu0 %v581
        %v603 = vpop.f32.mrf.mxu0
        %v604 = vadd.f32 0.0, %v603
        %605 = vdwg.mxu0
        %608 = vrot.lane.b32.xlu0 %v601, 16
        %v609 = vpop.permute.xlu0 %608
        %610 = vrot.lane.b32.xlu0 %v604, 16
        %v611 = vpop.permute.xlu0 %610
        %vm614 = vcmask 261248
        %615 = vst.msk [vmem:[#allocation3] sm:$0xff] %vm614, %v609
        %616 = vst.msk [vmem:[#allocation3 + $0x8] sm:$0xff] %vm614, %v611
        %v617 = vld [vmem:[#allocation2] sm:$0xff]
        %618 = vrot.lane.b32.xlu0 %v367, 96
        %v619 = vpop.permute.xlu0 %618
        %620 = vrot.lane.b32.xlu0 %v370, 96
        %v621 = vpop.permute.xlu0 %620
        %623 = vrot.lane.b32.xlu0 %v617, 96
        %v624 = vpop.permute.xlu0 %623
        %v625 = vsel %vm373, %v619, 0
        %v627 = vsel %vm373, %v621, 0
        %v629 = vsel %vm373, %v624, 0
        %631 = vmatpush.xpose.msra.mxu0 0.0
        %632 = vmatpush.xpose.msra.mxu0 0.0
        %633 = vmatpush.xpose.msra.mxu0 0.0
        %634 = vmatpush.xpose.msra.mxu0 0.0
        %635 = vmatpush.xpose.msra.mxu0 0.0
        %636 = vmatpush.xpose.msra.mxu0 0.0
        %637 = vmatpush.xpose.msra.mxu0 0.0
        %638 = vmatpush.xpose.msra.mxu0 0.0
        %639 = vmatpush.xpose.msra.mxu0 0.0
        %640 = vmatpush.xpose.msra.mxu0 0.0
        %641 = vmatpush.xpose.msra.mxu0 0.0
        %642 = vmatpush.xpose.msra.mxu0 0.0
        %643 = vmatpush.xpose.msra.mxu0 0.0
        %644 = vmatpush.xpose.msra.mxu0 0.0
        %645 = vmatpush.xpose.msra.mxu0 0.0
        %646 = vmatpush.xpose.msra.mxu0 %v629
        %647 = vmatmul.f32.gmra.mxu0 %v625
        %v648 = vpop.f32.mrf.mxu0
        %v649 = vadd.f32 0.0, %v648
        %650 = vmatmul.f32.gmra.mxu0 %v627
        %v651 = vpop.f32.mrf.mxu0
        %v652 = vadd.f32 0.0, %v651
        %653 = vdwg.mxu0
        %v654 = vsel %vm406, %v649, -inf
        %655 = vmax.xlane.f32.xlu0 %v654
        %v656 = vpop.xlane.xlu0 %655
        %v657 = vsel %vm406, %v652, -inf
        %658 = vmax.xlane.f32.xlu0 %v657
        %v659 = vpop.xlane.xlu0 %658
        %v660 = vsub.f32 %v649, %v656
        %v661 = vsub.f32 %v652, %v659
        %v662 = vmul.f32 %v660, 1.442695
        %v663 = vpow.pop %v662
        %v664 = vmul.f32 %v661, 1.442695
        %v665 = vpow.pop %v664
        %v666 = vsel %vm406, %v663, 0.0
        %667 = vadd.xlane.f32.xlu0 %v666
        %v668 = vpop.xlane.xlu0 %667
        %v669 = vsel %vm406, %v665, 0.0
        %670 = vadd.xlane.f32.xlu0 %v669
        %v671 = vpop.xlane.xlu0 %670
        %v672 = vrcp.pop %v668
        %v673 = vmul.f32 %v668, %v672
        %v674 = vsub.f32 1.0, %v673
        %v675 = vmul.f32 %v672, %v674
        %v676 = vadd.f32 %v672, %v675
        %vm677 = vweird.f32 %v668
        %vm678 = vweird.f32 %v672
        %vm679 = vmor %vm677, %vm678
        %v680 = vsel %vm679, %v672, %v676
        %v681 = vand.u32 2147483647, %v668
        %vm682 = vcmp.eq.f32.partialorder %v681, 8.507059e+37
        %v683 = vand.u32 %v668, 2147483648
        %v684 = vor.u32 1.1754944e-38, %v683
        %v685 = vsel %vm682, %v684, %v680
        %v686 = vrcp.pop %v671
        %v687 = vmul.f32 %v671, %v686
        %v688 = vsub.f32 1.0, %v687
        %v689 = vmul.f32 %v686, %v688
        %v690 = vadd.f32 %v686, %v689
        %vm691 = vweird.f32 %v671
        %vm692 = vweird.f32 %v686
        %vm693 = vmor %vm691, %vm692
        %v694 = vsel %vm693, %v686, %v690
        %v695 = vand.u32 2147483647, %v671
        %vm696 = vcmp.eq.f32.partialorder %v695, 8.507059e+37
        %v697 = vand.u32 %v671, 2147483648
        %v698 = vor.u32 1.1754944e-38, %v697
        %v699 = vsel %vm696, %v698, %v694
        %v700 = vmul.f32 %v663, %v685
        %v701 = vmul.f32 %v665, %v699
        %702 = vrot.lane.b32.xlu0 %v617, 32
        %v703 = vpop.permute.xlu0 %702
        %v706 = vsel %vm406, %v700, 0
        %v709 = vsel %vm406, %v701, 0
        %711 = vmatpush.msra.mxu0 0.0
        %712 = vmatpush.msra.mxu0 0.0
        %713 = vmatpush.msra.mxu0 0.0
        %714 = vmatpush.msra.mxu0 0.0
        %715 = vmatpush.msra.mxu0 0.0
        %716 = vmatpush.msra.mxu0 0.0
        %717 = vmatpush.msra.mxu0 0.0
        %718 = vmatpush.msra.mxu0 0.0
        %719 = vmatpush.msra.mxu0 0.0
        %720 = vmatpush.msra.mxu0 0.0
        %721 = vmatpush.msra.mxu0 0.0
        %722 = vmatpush.msra.mxu0 0.0
        %723 = vmatpush.msra.mxu0 0.0
        %724 = vmatpush.msra.mxu0 0.0
        %725 = vmatpush.msra.mxu0 0.0
        %726 = vmatpush.msra.mxu0 %v703
        %727 = vmatmul.f32.gmra.mxu0 %v706
        %v728 = vpop.f32.mrf.mxu0
        %v729 = vadd.f32 0.0, %v728
        %730 = vmatmul.f32.gmra.mxu0 %v709
        %v731 = vpop.f32.mrf.mxu0
        %v732 = vadd.f32 0.0, %v731
        %733 = vdwg.mxu0
        %736 = vrot.lane.b32.xlu0 %v729, 32
        %v737 = vpop.permute.xlu0 %736
        %738 = vrot.lane.b32.xlu0 %v732, 32
        %v739 = vpop.permute.xlu0 %738
        %vm742 = vcmask 392448
        %743 = vst.msk [vmem:[#allocation3] sm:$0xff] %vm742, %v737
        %744 = vst.msk [vmem:[#allocation3 + $0x8] sm:$0xff] %vm742, %v739
        %v745 = vld [vmem:[#allocation2] sm:$0xff]
        %746 = vrot.lane.b32.xlu0 %v367, 80
        %v747 = vpop.permute.xlu0 %746
        %748 = vrot.lane.b32.xlu0 %v370, 80
        %v749 = vpop.permute.xlu0 %748
        %751 = vrot.lane.b32.xlu0 %v745, 80
        %v752 = vpop.permute.xlu0 %751
        %v753 = vsel %vm373, %v747, 0
        %v755 = vsel %vm373, %v749, 0
        %v757 = vsel %vm373, %v752, 0
        %759 = vmatpush.xpose.msra.mxu0 0.0
        %760 = vmatpush.xpose.msra.mxu0 0.0
        %761 = vmatpush.xpose.msra.mxu0 0.0
        %762 = vmatpush.xpose.msra.mxu0 0.0
        %763 = vmatpush.xpose.msra.mxu0 0.0
        %764 = vmatpush.xpose.msra.mxu0 0.0
        %765 = vmatpush.xpose.msra.mxu0 0.0
        %766 = vmatpush.xpose.msra.mxu0 0.0
        %767 = vmatpush.xpose.msra.mxu0 0.0
        %768 = vmatpush.xpose.msra.mxu0 0.0
        %769 = vmatpush.xpose.msra.mxu0 0.0
        %770 = vmatpush.xpose.msra.mxu0 0.0
        %771 = vmatpush.xpose.msra.mxu0 0.0
        %772 = vmatpush.xpose.msra.mxu0 0.0
        %773 = vmatpush.xpose.msra.mxu0 0.0
        %774 = vmatpush.xpose.msra.mxu0 %v757
        %775 = vmatmul.f32.gmra.mxu0 %v753
        %v776 = vpop.f32.mrf.mxu0
        %v777 = vadd.f32 0.0, %v776
        %778 = vmatmul.f32.gmra.mxu0 %v755
        %v779 = vpop.f32.mrf.mxu0
        %v780 = vadd.f32 0.0, %v779
        %781 = vdwg.mxu0
        %v782 = vsel %vm406, %v777, -inf
        %783 = vmax.xlane.f32.xlu0 %v782
        %v784 = vpop.xlane.xlu0 %783
        %v785 = vsel %vm406, %v780, -inf
        %786 = vmax.xlane.f32.xlu0 %v785
        %v787 = vpop.xlane.xlu0 %786
        %v788 = vsub.f32 %v777, %v784
        %v789 = vsub.f32 %v780, %v787
        %v790 = vmul.f32 %v788, 1.442695
        %v791 = vpow.pop %v790
        %v792 = vmul.f32 %v789, 1.442695
        %v793 = vpow.pop %v792
        %v794 = vsel %vm406, %v791, 0.0
        %795 = vadd.xlane.f32.xlu0 %v794
        %v796 = vpop.xlane.xlu0 %795
        %v797 = vsel %vm406, %v793, 0.0
        %798 = vadd.xlane.f32.xlu0 %v797
        %v799 = vpop.xlane.xlu0 %798
        %v800 = vrcp.pop %v796
        %v801 = vmul.f32 %v796, %v800
        %v802 = vsub.f32 1.0, %v801
        %v803 = vmul.f32 %v800, %v802
        %v804 = vadd.f32 %v800, %v803
        %vm805 = vweird.f32 %v796
        %vm806 = vweird.f32 %v800
        %vm807 = vmor %vm805, %vm806
        %v808 = vsel %vm807, %v800, %v804
        %v809 = vand.u32 2147483647, %v796
        %vm810 = vcmp.eq.f32.partialorder %v809, 8.507059e+37
        %v811 = vand.u32 %v796, 2147483648
        %v812 = vor.u32 1.1754944e-38, %v811
        %v813 = vsel %vm810, %v812, %v808
        %v814 = vrcp.pop %v799
        %v815 = vmul.f32 %v799, %v814
        %v816 = vsub.f32 1.0, %v815
        %v817 = vmul.f32 %v814, %v816
        %v818 = vadd.f32 %v814, %v817
        %vm819 = vweird.f32 %v799
        %vm820 = vweird.f32 %v814
        %vm821 = vmor %vm819, %vm820
        %v822 = vsel %vm821, %v814, %v818
        %v823 = vand.u32 2147483647, %v799
        %vm824 = vcmp.eq.f32.partialorder %v823, 8.507059e+37
        %v825 = vand.u32 %v799, 2147483648
        %v826 = vor.u32 1.1754944e-38, %v825
        %v827 = vsel %vm824, %v826, %v822
        %v828 = vmul.f32 %v791, %v813
        %v829 = vmul.f32 %v793, %v827
        %830 = vrot.lane.b32.xlu0 %v745, 16
        %v831 = vpop.permute.xlu0 %830
        %v834 = vsel %vm406, %v828, 0
        %v837 = vsel %vm406, %v829, 0
        %839 = vmatpush.msra.mxu0 0.0
        %840 = vmatpush.msra.mxu0 0.0
        %841 = vmatpush.msra.mxu0 0.0
        %842 = vmatpush.msra.mxu0 0.0
        %843 = vmatpush.msra.mxu0 0.0
        %844 = vmatpush.msra.mxu0 0.0
        %845 = vmatpush.msra.mxu0 0.0
        %846 = vmatpush.msra.mxu0 0.0
        %847 = vmatpush.msra.mxu0 0.0
        %848 = vmatpush.msra.mxu0 0.0
        %849 = vmatpush.msra.mxu0 0.0
        %850 = vmatpush.msra.mxu0 0.0
        %851 = vmatpush.msra.mxu0 0.0
        %852 = vmatpush.msra.mxu0 0.0
        %853 = vmatpush.msra.mxu0 0.0
        %854 = vmatpush.msra.mxu0 %v831
        %855 = vmatmul.f32.gmra.mxu0 %v834
        %v856 = vpop.f32.mrf.mxu0
        %v857 = vadd.f32 0.0, %v856
        %858 = vmatmul.f32.gmra.mxu0 %v837
        %v859 = vpop.f32.mrf.mxu0
        %v860 = vadd.f32 0.0, %v859
        %861 = vdwg.mxu0
        %864 = vrot.lane.b32.xlu0 %v857, 48
        %v865 = vpop.permute.xlu0 %864
        %866 = vrot.lane.b32.xlu0 %v860, 48
        %v867 = vpop.permute.xlu0 %866
        %vm870 = vcmask 523648
        %871 = vst.msk [vmem:[#allocation3] sm:$0xff] %vm870, %v865
        %872 = vst.msk [vmem:[#allocation3 + $0x8] sm:$0xff] %vm870, %v867
        %v873 = vld [vmem:[#allocation3] sm:$0xff]
        %v874 = vld [vmem:[#allocation3 + $0x8] sm:$0xff]
        %v875 = vld [vmem:[%s4] sm:$0xff]
        %v876 = vld [vmem:[%s4 + $0x8] sm:$0xff]
        %v877 = vld [vmem:[%s4 + $0x10] sm:$0xff]
        %v878 = vld [vmem:[%s4 + $0x18] sm:$0xff]
        %v879 = vld [vmem:[%s4 + $0x20] sm:$0xff]
        %v880 = vld [vmem:[%s4 + $0x28] sm:$0xff]
        %v881 = vld [vmem:[%s4 + $0x30] sm:$0xff]
        %v882 = vld [vmem:[%s4 + $0x38] sm:$0xff]
        %v883 = vld [vmem:[%s5] sm:$0x1]
        %v885 = vperm.slane %v883, 0
        %vm887 = vcmask 523264
        %v889 = vsel %vm887, %v873, 0
        %v892 = vsel %vm887, %v874, 0
        %894 = vmatpush.msra.mxu0 0.0
        %895 = vmatpush.msra.mxu0 0.0
        %896 = vmatpush.msra.mxu0 0.0
        %897 = vmatpush.msra.mxu0 0.0
        %898 = vmatpush.msra.mxu0 0.0
        %899 = vmatpush.msra.mxu0 0.0
        %900 = vmatpush.msra.mxu0 0.0
        %901 = vmatpush.msra.mxu0 0.0
        %902 = vmatpush.msra.mxu0 %v882
        %903 = vmatpush.msra.mxu0 %v881
        %904 = vmatpush.msra.mxu0 %v880
        %905 = vmatpush.msra.mxu0 %v879
        %906 = vmatpush.msra.mxu0 %v878
        %907 = vmatpush.msra.mxu0 %v877
        %908 = vmatpush.msra.mxu0 %v876
        %909 = vmatpush.msra.mxu0 %v875
        %910 = vmatmul.f32.gmra.mxu0 %v889
        %v911 = vpop.f32.mrf.mxu0
        %v912 = vadd.f32 %v885, %v911
        %913 = vmatmul.f32.gmra.mxu0 %v892
        %v914 = vpop.f32.mrf.mxu0
        %v915 = vadd.f32 %v885, %v914
        %916 = vdwg.mxu0
        %917 = vst.msk [vmem:[%s291] sm:$0xff] %vm342, %v912
        %918 = vst.msk [vmem:[%s291 + $0x8] sm:$0xff] %vm342, %v915
        %s919 = sand.u32 %s181, 1
        %s920 = scalar_lea.sflag [#allocation6], %s919
        %s921 = sand.u32 %s181, 1
        %s922 = smul.addr %s921, 16
        %s923 = scalar_lea.vmem [#allocation7], %s922
        // Predicated region
        $region53: #{tpu_custom_call.1} parent=43 // pred_check
          %p924 = pneg %p191
        $region54: #{tpu_custom_call.1} parent=43 // pred_check_branch
          %926 = sbr.rel (%p924) target = $region56
        $region55: #{tpu_custom_call.1} parent=43 // pred_region
          %s927 = smul.u32 2, %s26
          %929 = vsyncadd %s920, 0
          %s930 = smul.addr %s25, 2
          %s931 = sadd.s32 %s927, %s930
          %s932 = smul.addr %s931, 8
          %s933 = scalar_lea.hbm %s6, %s932
          %s934 = sshll.u32 %s923, 4
          %s935 = int_to_ptr.vmem [resolvable:$true] %s934
          %s936 = sshll.u32 %s933, 4
          %s937 = int_to_ptr.hbm [resolvable:$true] %s936
          %942 = dma.vmem_to_hbm [thread:$0]  %s935, 256, %s937, %s920, 128, 128, 8
        $region56: #{tpu_custom_call.1} parent=43 // pred_fallthru
          _
      $region44: #{tpu_custom_call.1} parent=5 // pred_fallthru
        _
      %p943 = scmp.le.s32.totalorder 2, %s16
      // Predicated region
      $region57: #{tpu_custom_call.1} parent=5 // pred_check
        %p944 = pneg %p943
      $region58: #{tpu_custom_call.1} parent=5 // pred_check_branch
        %946 = sbr.rel (%p944) target = $region60
      $region59: #{tpu_custom_call.1} parent=5 // pred_region
        %s947 = ssub.s32 %s16, 2
        // Predicated region
        $region61: #{tpu_custom_call.1} parent=59 // pred_check
          %p948 = pneg %p197
        $region62: #{tpu_custom_call.1} parent=59 // pred_check_branch
          %950 = sbr.rel (%p948) target = $region64
        $region63: #{tpu_custom_call.1} parent=59 // pred_region
          %s951 = sand.u32 %s182, 1
          %s952 = scalar_lea.sflag [#allocation6], %s951
          %s953 = sand.u32 %s182, 1
          %s954 = smul.addr %s953, 16
          %s955 = scalar_lea.vmem [#allocation7], %s954
          %957 = dma.done %s952, 256
        $region64: #{tpu_custom_call.1} parent=59 // pred_fallthru
          _
      $region60: #{tpu_custom_call.1} parent=5 // pred_fallthru
        _
    $region6: #{tpu_custom_call.1} parent=1 // loop_footer
      %s20 = sadd.s32 1, %s16
    $region7: #{tpu_custom_call.1} parent=1 // loop_footer_branch
      %15 = sbr.rel target = $region3
    $region8: #{tpu_custom_call.1} parent=1 // loop_exit
      _
    %958 = vsyncpa [#allocation5], 1
    %s959 = scalar_lea.sflag [#allocation5], 1
    %960 = vsyncpa %s959, 1
    %961 = vsyncpa [#allocation6], 1
    %s962 = scalar_lea.sflag [#allocation6], 1
    %963 = vsyncpa %s962, 1

// kernel: tpu_custom_call.1
$region0: #{tpu_custom_call.1}
  #allocation0 [shape = 'u32[]', space=smem, size = 0x4, offset = 0x4, fixed_abs, tag = 'smem constant byte address 0x4 - core index']
  #allocation1 [shape = 'u32[72,128]{1,0:T(1,128)}', space=vmem, size = 0x9000, scoped, tag = 'internal scratch']
  #allocation2 [shape = 'f32[8,128]{1,0:T(8,128)}', space=vmem, size = 0x1000, scoped, tag = 'scratch operand']
  #allocation3 [shape = 'f32[16,64]{1,0:T(8,128)}', space=vmem, size = 0x2000, scoped, tag = 'scratch operand']
  %s0 = inlined_call_operand.vmem [shape: f32[2,16,32], index: 0, kind: input, shape index: {}]
  %s1 = inlined_call_operand.hbm [shape: f32[2,8,24], index: 1, kind: input, shape index: {}]
  %s2 = inlined_call_operand.vmem [shape: f32[32,64], index: 2, kind: input, shape index: {}]
  %s3 = inlined_call_operand.vmem [shape: f32[24,128], index: 3, kind: input, shape index: {}]
  %s4 = inlined_call_operand.vmem [shape: f32[64,32], index: 4, kind: input, shape index: {}]
  %s5 = inlined_call_operand.vmem [shape: f32[1,32], index: 5, kind: input, shape index: {}]
  %s6 = inlined_call_operand.hbm [shape: f32[2,16,32], index: 6, kind: output, shape index: {}]
  %s7 = sld [smem:[#allocation0]]
  $region65: #{tpu_custom_call.1} parent=0
    _
  %s9 = ssub.s32 1, %s7
  %s10 = scalar_select 0, %s9, %s7
  $region1: #{tpu_custom_call.1} parent=0
    #allocation4 [shape = 'u8[8192]{0}', space=vmem, size = 0x2000, scoped, tag = 'input window, operand 1']
    #allocation5 [shape = 's32[2]{0}', space=sflag, size = 0x8, scoped, tag = 'scoped memory for tpu_custom_call.1']
    #allocation6 [shape = 's32[2]{0}', space=sflag, size = 0x8, scoped, tag = 'scoped memory for tpu_custom_call.1']
    #allocation7 [shape = 'u8[16384]{0}', space=vmem, size = 0x4000, scoped, tag = 'output window, operand 0']
    %11 = vsyncpa [#allocation5], 0
    %s12 = scalar_lea.sflag [#allocation5], 1
    %13 = vsyncpa %s12, 0
    %14 = vsyncpa [#allocation6], 0
    %s15 = scalar_lea.sflag [#allocation6], 1
    %16 = vsyncpa %s15, 0
    loop: start=0, step=1, limit=4
    $region2: #{tpu_custom_call.1} parent=1 // loop_pre_header
      _
    $region3: #{tpu_custom_call.1} parent=1 // loop_header
      %s18 = sphi 0, %s22
      %p19 = scmp.ge.s32.totalorder %s18, 4
      %s25 = sphi 0, %s37
      %s26 = sphi 0, %s33
      %s27 = sphi 0, %s25
      %s28 = sphi 0, %s26
      %s29 = sphi 0, %s27
      %s30 = sphi 0, %s28
      %s42 = sphi 0, %s44
      %s45 = sphi 0, %s42
      %s46 = sphi 0, %s45
      %s62 = sphi 0, %s46
      %s68 = sphi 0, %s70
      %s71 = sphi 0, %s68
      %s72 = sphi 0, %s71
      %s88 = sphi 0, %s72
      %s92 = sphi 0, %s92
      %s94 = sphi 0, %s92
      %s95 = sphi 0, %s94
      %s109 = sphi 0, %s95
      %s113 = sphi 0, %s113
      %s115 = sphi 0, %s113
      %s116 = sphi 0, %s115
      %s130 = sphi 0, %s116
      %s134 = sphi 0, %s134
      %s136 = sphi 0, %s134
      %s137 = sphi 0, %s136
      %s151 = sphi 0, %s137
      %s155 = sphi 0, %s155
      %s157 = sphi 0, %s155
      %s158 = sphi 0, %s157
      %s172 = sphi 0, %s158
      %s180 = sphi 0, %s182
      %s183 = sphi 0, %s180
      %s184 = sphi 0, %s183
      %s200 = sphi 0, %s184
    $region4: #{tpu_custom_call.1} parent=1 // loop_header_branch
      %21 = sbr.rel (%p19) target = $region8
    $region5: #{tpu_custom_call.1} parent=1 // loop_body
      %s23 = ssub.s32 %s18, 1
      %s24 = ssub.s32 %s18, 2
      %s31 = sadd.s32 1, %s26
      %p32 = scmp.ge.s32.totalorder %s31, 1
      %s33 = scalar_select %p32, 0, %s31
      %s34 = sadd.s32 1, %s25
      %s35 = scalar_select %p32, %s34, %s25
      %p36 = scmp.ge.s32.totalorder %s35, 2
      %s37 = scalar_select %p36, 0, %s35
      %s38 = ssub.s32 %s25, %s37
      %s39 = ssub.s32 %s26, %s33
      %s40 = sor.u32 %s38, %s39
      %p41 = scmp.eq.s32.totalorder %s40, 0
      %s43 = sadd.s32 %s42, 1
      %s44 = scalar_select %p41, %s42, %s43
      %p47 = pneg %p41
      %p48 = scmp.eq.s32.totalorder %s18, 1
      %p49 = por %p47, %p48
      %p50 = scmp.ne.s32.totalorder %s42, %s45
      %p51 = scmp.eq.s32.totalorder %s18, 0
      %p52 = por %p50, %p51
      %p53 = scmp.ne.s32.totalorder %s42, %s45
      %p54 = scmp.eq.s32.totalorder %s23, 1
      %p55 = por %p53, %p54
      %p56 = scmp.ne.s32.totalorder %s45, %s46
      %p57 = scmp.eq.s32.totalorder %s23, 0
      %p58 = por %p56, %p57
      %p59 = scmp.ne.s32.totalorder %s45, %s46
      %p60 = scmp.eq.s32.totalorder %s24, 1
      %p61 = por %p59, %p60
      %p63 = scmp.ne.s32.totalorder %s46, %s62
      %p64 = scmp.eq.s32.totalorder %s24, 0
      %p65 = por %p63, %p64
      %s66 = ssub.s32 %s25, %s37
      %p67 = scmp.eq.s32.totalorder %s66, 0
      %s69 = sadd.s32 %s68, 1
      %s70 = scalar_select %p67, %s68, %s69
      %p73 = pneg %p67
      %p74 = scmp.eq.s32.totalorder %s18, 1
      %p75 = por %p73, %p74
      %p76 = scmp.ne.s32.totalorder %s68, %s71
      %p77 = scmp.eq.s32.totalorder %s18, 0
      %p78 = por %p76, %p77
      %p79 = scmp.ne.s32.totalorder %s68, %s71
      %p80 = scmp.eq.s32.totalorder %s23, 1
      %p81 = por %p79, %p80
      %p82 = scmp.ne.s32.totalorder %s71, %s72
      %p83 = scmp.eq.s32.totalorder %s23, 0
      %p84 = por %p82, %p83
      %p85 = scmp.ne.s32.totalorder %s71, %s72
      %p86 = scmp.eq.s32.totalorder %s24, 1
      %p87 = por %p85, %p86
      %p89 = scmp.ne.s32.totalorder %s72, %s88
      %p90 = scmp.eq.s32.totalorder %s24, 0
      %p91 = por %p89, %p90
      %s93 = sadd.s32 %s92, 1
      %p96 = scmp.eq.s32.totalorder %s18, 1
      %p97 = scmp.ne.s32.totalorder %s92, %s94
      %p98 = scmp.eq.s32.totalorder %s18, 0
      %p99 = por %p97, %p98
      %p100 = scmp.ne.s32.totalorder %s92, %s94
      %p101 = scmp.eq.s32.totalorder %s23, 1
      %p102 = por %p100, %p101
      %p103 = scmp.ne.s32.totalorder %s94, %s95
      %p104 = scmp.eq.s32.totalorder %s23, 0
      %p105 = por %p103, %p104
      %p106 = scmp.ne.s32.totalorder %s94, %s95
      %p107 = scmp.eq.s32.totalorder %s24, 1
      %p108 = por %p106, %p107
      %p110 = scmp.ne.s32.totalorder %s95, %s109
      %p111 = scmp.eq.s32.totalorder %s24, 0
      %p112 = por %p110, %p111
      %s114 = sadd.s32 %s113, 1
      %p117 = scmp.eq.s32.totalorder %s18, 1
      %p118 = scmp.ne.s32.totalorder %s113, %s115
      %p119 = scmp.eq.s32.totalorder %s18, 0
      %p120 = por %p118, %p119
      %p121 = scmp.ne.s32.totalorder %s113, %s115
      %p122 = scmp.eq.s32.totalorder %s23, 1
      %p123 = por %p121, %p122
      %p124 = scmp.ne.s32.totalorder %s115, %s116
      %p125 = scmp.eq.s32.totalorder %s23, 0
      %p126 = por %p124, %p125
      %p127 = scmp.ne.s32.totalorder %s115, %s116
      %p128 = scmp.eq.s32.totalorder %s24, 1
      %p129 = por %p127, %p128
      %p131 = scmp.ne.s32.totalorder %s116, %s130
      %p132 = scmp.eq.s32.totalorder %s24, 0
      %p133 = por %p131, %p132
      %s135 = sadd.s32 %s134, 1
      %p138 = scmp.eq.s32.totalorder %s18, 1
      %p139 = scmp.ne.s32.totalorder %s134, %s136
      %p140 = scmp.eq.s32.totalorder %s18, 0
      %p141 = por %p139, %p140
      %p142 = scmp.ne.s32.totalorder %s134, %s136
      %p143 = scmp.eq.s32.totalorder %s23, 1
      %p144 = por %p142, %p143
      %p145 = scmp.ne.s32.totalorder %s136, %s137
      %p146 = scmp.eq.s32.totalorder %s23, 0
      %p147 = por %p145, %p146
      %p148 = scmp.ne.s32.totalorder %s136, %s137
      %p149 = scmp.eq.s32.totalorder %s24, 1
      %p150 = por %p148, %p149
      %p152 = scmp.ne.s32.totalorder %s137, %s151
      %p153 = scmp.eq.s32.totalorder %s24, 0
      %p154 = por %p152, %p153
      %s156 = sadd.s32 %s155, 1
      %p159 = scmp.eq.s32.totalorder %s18, 1
      %p160 = scmp.ne.s32.totalorder %s155, %s157
      %p161 = scmp.eq.s32.totalorder %s18, 0
      %p162 = por %p160, %p161
      %p163 = scmp.ne.s32.totalorder %s155, %s157
      %p164 = scmp.eq.s32.totalorder %s23, 1
      %p165 = por %p163, %p164
      %p166 = scmp.ne.s32.totalorder %s157, %s158
      %p167 = scmp.eq.s32.totalorder %s23, 0
      %p168 = por %p166, %p167
      %p169 = scmp.ne.s32.totalorder %s157, %s158
      %p170 = scmp.eq.s32.totalorder %s24, 1
      %p171 = por %p169, %p170
      %p173 = scmp.ne.s32.totalorder %s158, %s172
      %p174 = scmp.eq.s32.totalorder %s24, 0
      %p175 = por %p173, %p174
      %s176 = ssub.s32 %s25, %s37
      %s177 = ssub.s32 %s26, %s33
      %s178 = sor.u32 %s176, %s177
      %p179 = scmp.eq.s32.totalorder %s178, 0
      %s181 = sadd.s32 %s180, 1
      %s182 = scalar_select %p179, %s180, %s181
      %p185 = pneg %p179
      %p186 = scmp.eq.s32.totalorder %s18, 1
      %p187 = por %p185, %p186
      %p188 = scmp.ne.s32.totalorder %s180, %s183
      %p189 = scmp.eq.s32.totalorder %s18, 0
      %p190 = por %p188, %p189
      %p191 = scmp.ne.s32.totalorder %s180, %s183
      %p192 = scmp.eq.s32.totalorder %s23, 1
      %p193 = por %p191, %p192
      %p194 = scmp.ne.s32.totalorder %s183, %s184
      %p195 = scmp.eq.s32.totalorder %s23, 0
      %p196 = por %p194, %p195
      %p197 = scmp.ne.s32.totalorder %s183, %s184
      %p198 = scmp.eq.s32.totalorder %s24, 1
      %p199 = por %p197, %p198
      %p201 = scmp.ne.s32.totalorder %s184, %s200
      %p202 = scmp.eq.s32.totalorder %s24, 0
      %p203 = por %p201, %p202
      %p204 = scmp.le.s32.totalorder 1, %s18
      %p205 = scmp.lt.s32.totalorder %s18, 3
      %p206 = pnand %p204, %p205
      %p207 = pneg %p206
      // Predicated region
      $region9: #{tpu_custom_call.1} parent=5 // pred_check
        _
      $region10: #{tpu_custom_call.1} parent=5 // pred_check_branch
        %209 = sbr.rel (%p206) target = $region12
      $region11: #{tpu_custom_call.1} parent=5 // pred_region
        %s210 = ssub.s32 %s18, 1
        // Predicated region
        $region13: #{tpu_custom_call.1} parent=11 // pred_check
          %p211 = pneg %p105
        $region14: #{tpu_custom_call.1} parent=11 // pred_check_branch
          %213 = sbr.rel (%p211) target = $region16
        $region15: #{tpu_custom_call.1} parent=11 // pred_region
          _
        $region16: #{tpu_custom_call.1} parent=11 // pred_fallthru
          _
        // Predicated region
        $region17: #{tpu_custom_call.1} parent=11 // pred_check
          %p214 = pneg %p126
        $region18: #{tpu_custom_call.1} parent=11 // pred_check_branch
          %216 = sbr.rel (%p214) target = $region20
        $region19: #{tpu_custom_call.1} parent=11 // pred_region
          _
        $region20: #{tpu_custom_call.1} parent=11 // pred_fallthru
          _
        // Predicated region
        $region21: #{tpu_custom_call.1} parent=11 // pred_check
          %p217 = pneg %p147
        $region22: #{tpu_custom_call.1} parent=11 // pred_check_branch
          %219 = sbr.rel (%p217) target = $region24
        $region23: #{tpu_custom_call.1} parent=11 // pred_region
          _
        $region24: #{tpu_custom_call.1} parent=11 // pred_fallthru
          _
        // Predicated region
        $region25: #{tpu_custom_call.1} parent=11 // pred_check
          %p220 = pneg %p168
        $region26: #{tpu_custom_call.1} parent=11 // pred_check_branch
          %222 = sbr.rel (%p220) target = $region28
        $region27: #{tpu_custom_call.1} parent=11 // pred_region
          _
        $region28: #{tpu_custom_call.1} parent=11 // pred_fallthru
          _
      $region12: #{tpu_custom_call.1} parent=5 // pred_fallthru
        _
      %p223 = scmp.lt.s32.totalorder %s18, 2
      // Predicated region
      $region29: #{tpu_custom_call.1} parent=5 // pred_check
        %p224 = pneg %p223
      $region30: #{tpu_custom_call.1} parent=5 // pred_check_branch
        %226 = sbr.rel (%p224) target = $region32
      $region31: #{tpu_custom_call.1} parent=5 // pred_region
        // Predicated region
        $region33: #{tpu_custom_call.1} parent=31 // pred_check
          %p227 = pneg %p52
        $region34: #{tpu_custom_call.1} parent=31 // pred_check_branch
          %229 = sbr.rel (%p227) target = $region36
        $region35: #{tpu_custom_call.1} parent=31 // pred_region
          %s230 = smul.u32 2, %s26
          %p231 = scmp.lt.s32.totalorder %s25, 1
          %s232 = scalar_select %p231, %s25, 1
          %p233 = scmp.lt.s32.totalorder %s230, 1
          %s234 = scalar_select %p233, %s230, 1
          %s235 = smul.addr %s232, 2
          %s236 = sadd.s32 %s234, %s235
          %s237 = smul.addr %s236, 8
          %s238 = scalar_lea.vmem %s0, %s237
          %s239 = smul.u32 2, %s26
        $region36: #{tpu_custom_call.1} parent=31 // pred_fallthru
          _
        // Predicated region
        $region37: #{tpu_custom_call.1} parent=31 // pred_check
          %p240 = pneg %p78
        $region38: #{tpu_custom_call.1} parent=31 // pred_check_branch
          %242 = sbr.rel (%p240) target = $region40
        $region39: #{tpu_custom_call.1} parent=31 // pred_region
          %s243 = sand.u32 %s68, 1
          %s244 = scalar_lea.sflag [#allocation5], %s243
          %s245 = sand.u32 %s68, 1
          %s246 = smul.addr %s245, 8
          %s247 = scalar_lea.vmem [#allocation4], %s246
          %249 = vsyncadd %s244, 0
          %s250 = smul.addr %s25, 8
          %s251 = scalar_lea.hbm %s1, %s250
          %s253 = sshll.u32 %s251, 4
          %s254 = int_to_ptr.hbm [resolvable:$true] %s253
          %s255 = sshll.u32 %s247, 4
          %s256 = int_to_ptr.vmem [resolvable:$true] %s255
          %258 = dma.hbm_to_vmem [thread:$0]  %s254, 128, %s256, %s244
        $region40: #{tpu_custom_call.1} parent=31 // pred_fallthru
          _
      $region32: #{tpu_custom_call.1} parent=5 // pred_fallthru
        _
      %p259 = scmp.le.s32.totalorder 1, %s18
      %p260 = scmp.lt.s32.totalorder %s18, 3
      %p261 = pnand %p259, %p260
      %p262 = pneg %p261
      // Predicated region
      $region41: #{tpu_custom_call.1} parent=5 // pred_check
        _
      $region42: #{tpu_custom_call.1} parent=5 // pred_check_branch
        %264 = sbr.rel (%p261) target = $region44
      $region43: #{tpu_custom_call.1} parent=5 // pred_region
        %s265 = ssub.s32 %s18, 1
        %s266 = sand.u32 %s71, 1
        %s267 = scalar_lea.sflag [#allocation5], %s266
        %s268 = sand.u32 %s71, 1
        %s269 = smul.addr %s268, 8
        %s270 = scalar_lea.vmem [#allocation4], %s269
        // Predicated region
        $region45: #{tpu_custom_call.1} parent=43 // pred_check
          %p271 = pneg %p84
        $region46: #{tpu_custom_call.1} parent=43 // pred_check_branch
          %273 = sbr.rel (%p271) target = $region48
        $region47: #{tpu_custom_call.1} parent=43 // pred_region
          %275 = dma.done %s267, 128
        $region48: #{tpu_custom_call.1} parent=43 // pred_fallthru
          _
        %s276 = smul.u32 2, %s28
        %p277 = scmp.lt.s32.totalorder %s27, 1
        %s278 = scalar_select %p277, %s27, 1
        %p279 = scmp.lt.s32.totalorder %s276, 1
        %s280 = scalar_select %p279, %s276, 1
        %s281 = smul.addr %s278, 2
        %s282 = sadd.s32 %s280, %s281
        %s283 = smul.addr %s282, 8
        %s284 = scalar_lea.vmem %s0, %s283
        %p285 = pneg %p58
        %p286 = pneg %p55
        %s287 = sand.u32 %s71, 1
        %s288 = scalar_lea.sflag [#allocation5], %s287
        %s289 = sand.u32 %s71, 1
        %s290 = smul.addr %s289, 8
        %s291 = scalar_lea.vmem [#allocation4], %s290
        %p292 = pneg %p84
        %p293 = pneg %p81
        %p294 = pneg %p105
        %p295 = pneg %p102
        %p296 = pneg %p126
        %p297 = pneg %p123
        %p298 = pneg %p147
        %p299 = pneg %p144
        %p300 = pneg %p168
        %p301 = pneg %p165
        %p302 = pneg %p196
        %p303 = pneg %p193
        %s304 = sand.u32 %s183, 1
        %s305 = scalar_lea.sflag [#allocation6], %s304
        %s306 = sand.u32 %s183, 1
        %s307 = smul.addr %s306, 16
        %s308 = scalar_lea.vmem [#allocation7], %s307
        %s309 = smul.u32 2, %s28
        %p310 = scmp.lt.s32.totalorder %s27, 1
        %s311 = scalar_select %p310, %s27, 1
        %p312 = scmp.lt.s32.totalorder %s309, 1
        %s313 = scalar_select %p312, %s309, 1
        %s314 = smul.addr %s311, 2
        %s315 = sadd.s32 %s313, %s314
        %s316 = smul.addr %s315, 8
        %s317 = scalar_lea.vmem %s0, %s316
        %s318 = smul.u32 2, %s28
        %s319 = smul.u32 2, %s28
        %p320 = scmp.eq.s32.totalorder %s28, 0
        // Predicated region
        $region49: #{tpu_custom_call.1} parent=43 // pred_check
          %p321 = pneg %p320
        $region50: #{tpu_custom_call.1} parent=43 // pred_check_branch
          %323 = sbr.rel (%p321) target = $region52
        $region51: #{tpu_custom_call.1} parent=43 // pred_region
          %v324 = vld [vmem:[%s270] sm:$0xff]
          %v325 = vld [vmem:[%s3] sm:$0xff]
          %v326 = vld [vmem:[%s3 + $0x8] sm:$0xff]
          %v327 = vld [vmem:[%s3 + $0x10] sm:$0xff]
          %vm328 = vcmask 195584
          %v330 = vsel %vm328, %v324, 0
          %332 = vmatpush.msra.mxu0 0.0
          %333 = vmatpush.msra.mxu0 0.0
          %334 = vmatpush.msra.mxu0 0.0
          %335 = vmatpush.msra.mxu0 0.0
          %336 = vmatpush.msra.mxu0 0.0
          %337 = vmatpush.msra.mxu0 0.0
          %338 = vmatpush.msra.mxu0 0.0
          %339 = vmatpush.msra.mxu0 0.0
          %340 = vmatpush.msra.mxu0 0.0
          %341 = vmatpush.msra.mxu0 0.0
          %342 = vmatpush.msra.mxu0 0.0
          %343 = vmatpush.msra.mxu0 0.0
          %344 = vmatpush.msra.mxu0 0.0
          %345 = vmatpush.msra.mxu0 %v327
          %346 = vmatpush.msra.mxu0 %v326
          %347 = vmatpush.msra.mxu0 %v325
          %348 = vmatmul.f32.gmra.mxu0 %v330
          %v349 = vpop.f32.mrf.mxu0
          %v350 = vadd.f32 0.0, %v349
          %351 = vdwg.mxu0
          %352 = vst [vmem:[#allocation2] sm:$0xff] %v350
        $region52: #{tpu_custom_call.1} parent=43 // pred_fallthru
          _
        %v353 = vld [vmem:[%s317] sm:$0xff]
        %v354 = vld [vmem:[%s317 + $0x8] sm:$0xff]
        %v355 = vld [vmem:[%s2] sm:$0xff]
        %v356 = vld [vmem:[%s2 + $0x8] sm:$0xff]
        %v357 = vld [vmem:[%s2 + $0x10] sm:$0xff]
        %v358 = vld [vmem:[%s2 + $0x18] sm:$0xff]
        %vm359 = vcmask 261120
        %v361 = vsel %vm359, %v353, 0
        %v364 = vsel %vm359, %v354, 0
        %366 = vmatpush.msra.mxu0 0.0
        %367 = vmatpush.msra.mxu0 0.0
        %368 = vmatpush.msra.mxu0 0.0
        %369 = vmatpush.msra.mxu0 0.0
        %370 = vmatpush.msra.mxu0 0.0
        %371 = vmatpush.msra.mxu0 0.0
        %372 = vmatpush.msra.mxu0 0.0
        %373 = vmatpush.msra.mxu0 0.0
        %374 = vmatpush.msra.mxu0 0.0
        %375 = vmatpush.msra.mxu0 0.0
        %376 = vmatpush.msra.mxu0 0.0
        %377 = vmatpush.msra.mxu0 0.0
        %378 = vmatpush.msra.mxu0 %v358
        %379 = vmatpush.msra.mxu0 %v357
        %380 = vmatpush.msra.mxu0 %v356
        %381 = vmatpush.msra.mxu0 %v355
        %382 = vmatmul.f32.gmra.mxu0 %v361
        %v383 = vpop.f32.mrf.mxu0
        %v384 = vadd.f32 0.0, %v383
        %385 = vmatmul.f32.gmra.mxu0 %v364
        %v386 = vpop.f32.mrf.mxu0
        %v387 = vadd.f32 0.0, %v386
        %388 = vdwg.mxu0
        %v389 = vld [vmem:[#allocation2] sm:$0xff]
        %vm390 = vcmask 130048
        %v392 = vsel %vm390, %v384, 0
        %v395 = vsel %vm390, %v387, 0
        %v398 = vsel %vm390, %v389, 0
        %400 = vmatpush.xpose.msra.mxu0 0.0
        %401 = vmatpush.xpose.msra.mxu0 0.0
        %402 = vmatpush.xpose.msra.mxu0 0.0
        %403 = vmatpush.xpose.msra.mxu0 0.0
        %404 = vmatpush.xpose.msra.mxu0 0.0
        %405 = vmatpush.xpose.msra.mxu0 0.0
        %406 = vmatpush.xpose.msra.mxu0 0.0
        %407 = vmatpush.xpose.msra.mxu0 0.0
        %408 = vmatpush.xpose.msra.mxu0 0.0
        %409 = vmatpush.xpose.msra.mxu0 0.0
        %410 = vmatpush.xpose.msra.mxu0 0.0
        %411 = vmatpush.xpose.msra.mxu0 0.0
        %412 = vmatpush.xpose.msra.mxu0 0.0
        %413 = vmatpush.xpose.msra.mxu0 0.0
        %414 = vmatpush.xpose.msra.mxu0 0.0
        %415 = vmatpush.xpose.msra.mxu0 %v398
        %416 = vmatmul.f32.gmra.mxu0 %v392
        %v417 = vpop.f32.mrf.mxu0
        %v418 = vadd.f32 0.0, %v417
        %419 = vmatmul.f32.gmra.mxu0 %v395
        %v420 = vpop.f32.mrf.mxu0
        %v421 = vadd.f32 0.0, %v420
        %422 = vdwg.mxu0
        %vm423 = vcmask 64512
        %v424 = vsel %vm423, %v418, -inf
        %425 = vmax.xlane.f32.xlu0 %v424
        %v426 = vpop.xlane.xlu0 %425
        %v427 = vsel %vm423, %v421, -inf
        %428 = vmax.xlane.f32.xlu0 %v427
        %v429 = vpop.xlane.xlu0 %428
        %v430 = vsub.f32 %v418, %v426
        %v431 = vsub.f32 %v421, %v429
        %v432 = vmul.f32 %v430, 1.442695
        %v433 = vpow.pop %v432
        %v434 = vmul.f32 %v431, 1.442695
        %v435 = vpow.pop %v434
        %v436 = vsel %vm423, %v433, 0.0
        %437 = vadd.xlane.f32.xlu0 %v436
        %v438 = vpop.xlane.xlu0 %437
        %v439 = vsel %vm423, %v435, 0.0
        %440 = vadd.xlane.f32.xlu0 %v439
        %v441 = vpop.xlane.xlu0 %440
        %v442 = vrcp.pop %v438
        %v443 = vmul.f32 %v438, %v442
        %v444 = vsub.f32 1.0, %v443
        %v445 = vmul.f32 %v442, %v444
        %v446 = vadd.f32 %v442, %v445
        %vm447 = vweird.f32 %v438
        %vm448 = vweird.f32 %v442
        %vm449 = vmor %vm447, %vm448
        %v450 = vsel %vm449, %v442, %v446
        %v451 = vand.u32 2147483647, %v438
        %vm452 = vcmp.eq.f32.partialorder %v451, 8.507059e+37
        %v453 = vand.u32 %v438, 2147483648
        %v454 = vor.u32 1.1754944e-38, %v453
        %v455 = vsel %vm452, %v454, %v450
        %v456 = vrcp.pop %v441
        %v457 = vmul.f32 %v441, %v456
        %v458 = vsub.f32 1.0, %v457
        %v459 = vmul.f32 %v456, %v458
        %v460 = vadd.f32 %v456, %v459
        %vm461 = vweird.f32 %v441
        %vm462 = vweird.f32 %v456
        %vm463 = vmor %vm461, %vm462
        %v464 = vsel %vm463, %v456, %v460
        %v465 = vand.u32 2147483647, %v441
        %vm466 = vcmp.eq.f32.partialorder %v465, 8.507059e+37
        %v467 = vand.u32 %v441, 2147483648
        %v468 = vor.u32 1.1754944e-38, %v467
        %v469 = vsel %vm466, %v468, %v464
        %v470 = vmul.f32 %v433, %v455
        %v471 = vmul.f32 %v435, %v469
        %472 = vrot.lane.b32.xlu0 %v389, 64
        %v473 = vpop.permute.xlu0 %472
        %v476 = vsel %vm423, %v470, 0
        %v479 = vsel %vm423, %v471, 0
        %481 = vmatpush.msra.mxu0 0.0
        %482 = vmatpush.msra.mxu0 0.0
        %483 = vmatpush.msra.mxu0 0.0
        %484 = vmatpush.msra.mxu0 0.0
        %485 = vmatpush.msra.mxu0 0.0
        %486 = vmatpush.msra.mxu0 0.0
        %487 = vmatpush.msra.mxu0 0.0
        %488 = vmatpush.msra.mxu0 0.0
        %489 = vmatpush.msra.mxu0 0.0
        %490 = vmatpush.msra.mxu0 0.0
        %491 = vmatpush.msra.mxu0 0.0
        %492 = vmatpush.msra.mxu0 0.0
        %493 = vmatpush.msra.mxu0 0.0
        %494 = vmatpush.msra.mxu0 0.0
        %495 = vmatpush.msra.mxu0 0.0
        %496 = vmatpush.msra.mxu0 %v473
        %497 = vmatmul.f32.gmra.mxu0 %v476
        %v498 = vpop.f32.mrf.mxu0
        %v499 = vadd.f32 0.0, %v498
        %500 = vmatmul.f32.gmra.mxu0 %v479
        %v501 = vpop.f32.mrf.mxu0
        %v502 = vadd.f32 0.0, %v501
        %503 = vdwg.mxu0
        %504 = vst.msk [vmem:[#allocation3] sm:$0xff] %vm390, %v499
        %505 = vst.msk [vmem:[#allocation3 + $0x8] sm:$0xff] %vm390, %v502
        %v506 = vld [vmem:[#allocation2] sm:$0xff]
        %507 = vrot.lane.b32.xlu0 %v384, 112
        %v508 = vpop.permute.xlu0 %507
        %509 = vrot.lane.b32.xlu0 %v387, 112
        %v510 = vpop.permute.xlu0 %509
        %512 = vrot.lane.b32.xlu0 %v506, 112
        %v513 = vpop.permute.xlu0 %512
        %v514 = vsel %vm390, %v508, 0
        %v516 = vsel %vm390, %v510, 0
        %v518 = vsel %vm390, %v513, 0
        %520 = vmatpush.xpose.msra.mxu0 0.0
        %521 = vmatpush.xpose.msra.mxu0 0.0
        %522 = vmatpush.xpose.msra.mxu0 0.0
        %523 = vmatpush.xpose.msra.mxu0 0.0
        %524 = vmatpush.xpose.msra.mxu0 0.0
        %525 = vmatpush.xpose.msra.mxu0 0.0
        %526 = vmatpush.xpose.msra.mxu0 0.0
        %527 = vmatpush.xpose.msra.mxu0 0.0
        %528 = vmatpush.xpose.msra.mxu0 0.0
        %529 = vmatpush.xpose.msra.mxu0 0.0
        %530 = vmatpush.xpose.msra.mxu0 0.0
        %531 = vmatpush.xpose.msra.mxu0 0.0
        %532 = vmatpush.xpose.msra.mxu0 0.0
        %533 = vmatpush.xpose.msra.mxu0 0.0
        %534 = vmatpush.xpose.msra.mxu0 0.0
        %535 = vmatpush.xpose.msra.mxu0 %v518
        %536 = vmatmul.f32.gmra.mxu0 %v514
        %v537 = vpop.f32.mrf.mxu0
        %v538 = vadd.f32 0.0, %v537
        %539 = vmatmul.f32.gmra.mxu0 %v516
        %v540 = vpop.f32.mrf.mxu0
        %v541 = vadd.f32 0.0, %v540
        %542 = vdwg.mxu0
        %v543 = vsel %vm423, %v538, -inf
        %544 = vmax.xlane.f32.xlu0 %v543
        %v545 = vpop.xlane.xlu0 %544
        %v546 = vsel %vm423, %v541, -inf
        %547 = vmax.xlane.f32.xlu0 %v546
        %v548 = vpop.xlane.xlu0 %547
        %v549 = vsub.f32 %v538, %v545
        %v550 = vsub.f32 %v541, %v548
        %v551 = vmul.f32 %v549, 1.442695
        %v552 = vpow.pop %v551
        %v553 = vmul.f32 %v550, 1.442695
        %v554 = vpow.pop %v553
        %v555 = vsel %vm423, %v552, 0.0
        %556 = vadd.xlane.f32.xlu0 %v555
        %v557 = vpop.xlane.xlu0 %556
        %v558 = vsel %vm423, %v554, 0.0
        %559 = vadd.xlane.f32.xlu0 %v558
        %v560 = vpop.xlane.xlu0 %559
        %v561 = vrcp.pop %v557
        %v562 = vmul.f32 %v557, %v561
        %v563 = vsub.f32 1.0, %v562
        %v564 = vmul.f32 %v561, %v563
        %v565 = vadd.f32 %v561, %v564
        %vm566 = vweird.f32 %v557
        %vm567 = vweird.f32 %v561
        %vm568 = vmor %vm566, %vm567
        %v569 = vsel %vm568, %v561, %v565
        %v570 = vand.u32 2147483647, %v557
        %vm571 = vcmp.eq.f32.partialorder %v570, 8.507059e+37
        %v572 = vand.u32 %v557, 2147483648
        %v573 = vor.u32 1.1754944e-38, %v572
        %v574 = vsel %vm571, %v573, %v569
        %v575 = vrcp.pop %v560
        %v576 = vmul.f32 %v560, %v575
        %v577 = vsub.f32 1.0, %v576
        %v578 = vmul.f32 %v575, %v577
        %v579 = vadd.f32 %v575, %v578
        %vm580 = vweird.f32 %v560
        %vm581 = vweird.f32 %v575
        %vm582 = vmor %vm580, %vm581
        %v583 = vsel %vm582, %v575, %v579
        %v584 = vand.u32 2147483647, %v560
        %vm585 = vcmp.eq.f32.partialorder %v584, 8.507059e+37
        %v586 = vand.u32 %v560, 2147483648
        %v587 = vor.u32 1.1754944e-38, %v586
        %v588 = vsel %vm585, %v587, %v583
        %v589 = vmul.f32 %v552, %v574
        %v590 = vmul.f32 %v554, %v588
        %591 = vrot.lane.b32.xlu0 %v506, 48
        %v592 = vpop.permute.xlu0 %591
        %v595 = vsel %vm423, %v589, 0
        %v598 = vsel %vm423, %v590, 0
        %600 = vmatpush.msra.mxu0 0.0
        %601 = vmatpush.msra.mxu0 0.0
        %602 = vmatpush.msra.mxu0 0.0
        %603 = vmatpush.msra.mxu0 0.0
        %604 = vmatpush.msra.mxu0 0.0
        %605 = vmatpush.msra.mxu0 0.0
        %606 = vmatpush.msra.mxu0 0.0
        %607 = vmatpush.msra.mxu0 0.0
        %608 = vmatpush.msra.mxu0 0.0
        %609 = vmatpush.msra.mxu0 0.0
        %610 = vmatpush.msra.mxu0 0.0
        %611 = vmatpush.msra.mxu0 0.0
        %612 = vmatpush.msra.mxu0 0.0
        %613 = vmatpush.msra.mxu0 0.0
        %614 = vmatpush.msra.mxu0 0.0
        %615 = vmatpush.msra.mxu0 %v592
        %616 = vmatmul.f32.gmra.mxu0 %v595
        %v617 = vpop.f32.mrf.mxu0
        %v618 = vadd.f32 0.0, %v617
        %619 = vmatmul.f32.gmra.mxu0 %v598
        %v620 = vpop.f32.mrf.mxu0
        %v621 = vadd.f32 0.0, %v620
        %622 = vdwg.mxu0
        %625 = vrot.lane.b32.xlu0 %v618, 16
        %v626 = vpop.permute.xlu0 %625
        %627 = vrot.lane.b32.xlu0 %v621, 16
        %v628 = vpop.permute.xlu0 %627
        %vm631 = vcmask 261248
        %632 = vst.msk [vmem:[#allocation3] sm:$0xff] %vm631, %v626
        %633 = vst.msk [vmem:[#allocation3 + $0x8] sm:$0xff] %vm631, %v628
        %v634 = vld [vmem:[#allocation2] sm:$0xff]
        %635 = vrot.lane.b32.xlu0 %v384, 96
        %v636 = vpop.permute.xlu0 %635
        %637 = vrot.lane.b32.xlu0 %v387, 96
        %v638 = vpop.permute.xlu0 %637
        %640 = vrot.lane.b32.xlu0 %v634, 96
        %v641 = vpop.permute.xlu0 %640
        %v642 = vsel %vm390, %v636, 0
        %v644 = vsel %vm390, %v638, 0
        %v646 = vsel %vm390, %v641, 0
        %648 = vmatpush.xpose.msra.mxu0 0.0
        %649 = vmatpush.xpose.msra.mxu0 0.0
        %650 = vmatpush.xpose.msra.mxu0 0.0
        %651 = vmatpush.xpose.msra.mxu0 0.0
        %652 = vmatpush.xpose.msra.mxu0 0.0
        %653 = vmatpush.xpose.msra.mxu0 0.0
        %654 = vmatpush.xpose.msra.mxu0 0.0
        %655 = vmatpush.xpose.msra.mxu0 0.0
        %656 = vmatpush.xpose.msra.mxu0 0.0
        %657 = vmatpush.xpose.msra.mxu0 0.0
        %658 = vmatpush.xpose.msra.mxu0 0.0
        %659 = vmatpush.xpose.msra.mxu0 0.0
        %660 = vmatpush.xpose.msra.mxu0 0.0
        %661 = vmatpush.xpose.msra.mxu0 0.0
        %662 = vmatpush.xpose.msra.mxu0 0.0
        %663 = vmatpush.xpose.msra.mxu0 %v646
        %664 = vmatmul.f32.gmra.mxu0 %v642
        %v665 = vpop.f32.mrf.mxu0
        %v666 = vadd.f32 0.0, %v665
        %667 = vmatmul.f32.gmra.mxu0 %v644
        %v668 = vpop.f32.mrf.mxu0
        %v669 = vadd.f32 0.0, %v668
        %670 = vdwg.mxu0
        %v671 = vsel %vm423, %v666, -inf
        %672 = vmax.xlane.f32.xlu0 %v671
        %v673 = vpop.xlane.xlu0 %672
        %v674 = vsel %vm423, %v669, -inf
        %675 = vmax.xlane.f32.xlu0 %v674
        %v676 = vpop.xlane.xlu0 %675
        %v677 = vsub.f32 %v666, %v673
        %v678 = vsub.f32 %v669, %v676
        %v679 = vmul.f32 %v677, 1.442695
        %v680 = vpow.pop %v679
        %v681 = vmul.f32 %v678, 1.442695
        %v682 = vpow.pop %v681
        %v683 = vsel %vm423, %v680, 0.0
        %684 = vadd.xlane.f32.xlu0 %v683
        %v685 = vpop.xlane.xlu0 %684
        %v686 = vsel %vm423, %v682, 0.0
        %687 = vadd.xlane.f32.xlu0 %v686
        %v688 = vpop.xlane.xlu0 %687
        %v689 = vrcp.pop %v685
        %v690 = vmul.f32 %v685, %v689
        %v691 = vsub.f32 1.0, %v690
        %v692 = vmul.f32 %v689, %v691
        %v693 = vadd.f32 %v689, %v692
        %vm694 = vweird.f32 %v685
        %vm695 = vweird.f32 %v689
        %vm696 = vmor %vm694, %vm695
        %v697 = vsel %vm696, %v689, %v693
        %v698 = vand.u32 2147483647, %v685
        %vm699 = vcmp.eq.f32.partialorder %v698, 8.507059e+37
        %v700 = vand.u32 %v685, 2147483648
        %v701 = vor.u32 1.1754944e-38, %v700
        %v702 = vsel %vm699, %v701, %v697
        %v703 = vrcp.pop %v688
        %v704 = vmul.f32 %v688, %v703
        %v705 = vsub.f32 1.0, %v704
        %v706 = vmul.f32 %v703, %v705
        %v707 = vadd.f32 %v703, %v706
        %vm708 = vweird.f32 %v688
        %vm709 = vweird.f32 %v703
        %vm710 = vmor %vm708, %vm709
        %v711 = vsel %vm710, %v703, %v707
        %v712 = vand.u32 2147483647, %v688
        %vm713 = vcmp.eq.f32.partialorder %v712, 8.507059e+37
        %v714 = vand.u32 %v688, 2147483648
        %v715 = vor.u32 1.1754944e-38, %v714
        %v716 = vsel %vm713, %v715, %v711
        %v717 = vmul.f32 %v680, %v702
        %v718 = vmul.f32 %v682, %v716
        %719 = vrot.lane.b32.xlu0 %v634, 32
        %v720 = vpop.permute.xlu0 %719
        %v723 = vsel %vm423, %v717, 0
        %v726 = vsel %vm423, %v718, 0
        %728 = vmatpush.msra.mxu0 0.0
        %729 = vmatpush.msra.mxu0 0.0
        %730 = vmatpush.msra.mxu0 0.0
        %731 = vmatpush.msra.mxu0 0.0
        %732 = vmatpush.msra.mxu0 0.0
        %733 = vmatpush.msra.mxu0 0.0
        %734 = vmatpush.msra.mxu0 0.0
        %735 = vmatpush.msra.mxu0 0.0
        %736 = vmatpush.msra.mxu0 0.0
        %737 = vmatpush.msra.mxu0 0.0
        %738 = vmatpush.msra.mxu0 0.0
        %739 = vmatpush.msra.mxu0 0.0
        %740 = vmatpush.msra.mxu0 0.0
        %741 = vmatpush.msra.mxu0 0.0
        %742 = vmatpush.msra.mxu0 0.0
        %743 = vmatpush.msra.mxu0 %v720
        %744 = vmatmul.f32.gmra.mxu0 %v723
        %v745 = vpop.f32.mrf.mxu0
        %v746 = vadd.f32 0.0, %v745
        %747 = vmatmul.f32.gmra.mxu0 %v726
        %v748 = vpop.f32.mrf.mxu0
        %v749 = vadd.f32 0.0, %v748
        %750 = vdwg.mxu0
        %753 = vrot.lane.b32.xlu0 %v746, 32
        %v754 = vpop.permute.xlu0 %753
        %755 = vrot.lane.b32.xlu0 %v749, 32
        %v756 = vpop.permute.xlu0 %755
        %vm759 = vcmask 392448
        %760 = vst.msk [vmem:[#allocation3] sm:$0xff] %vm759, %v754
        %761 = vst.msk [vmem:[#allocation3 + $0x8] sm:$0xff] %vm759, %v756
        %v762 = vld [vmem:[#allocation2] sm:$0xff]
        %763 = vrot.lane.b32.xlu0 %v384, 80
        %v764 = vpop.permute.xlu0 %763
        %765 = vrot.lane.b32.xlu0 %v387, 80
        %v766 = vpop.permute.xlu0 %765
        %768 = vrot.lane.b32.xlu0 %v762, 80
        %v769 = vpop.permute.xlu0 %768
        %v770 = vsel %vm390, %v764, 0
        %v772 = vsel %vm390, %v766, 0
        %v774 = vsel %vm390, %v769, 0
        %776 = vmatpush.xpose.msra.mxu0 0.0
        %777 = vmatpush.xpose.msra.mxu0 0.0
        %778 = vmatpush.xpose.msra.mxu0 0.0
        %779 = vmatpush.xpose.msra.mxu0 0.0
        %780 = vmatpush.xpose.msra.mxu0 0.0
        %781 = vmatpush.xpose.msra.mxu0 0.0
        %782 = vmatpush.xpose.msra.mxu0 0.0
        %783 = vmatpush.xpose.msra.mxu0 0.0
        %784 = vmatpush.xpose.msra.mxu0 0.0
        %785 = vmatpush.xpose.msra.mxu0 0.0
        %786 = vmatpush.xpose.msra.mxu0 0.0
        %787 = vmatpush.xpose.msra.mxu0 0.0
        %788 = vmatpush.xpose.msra.mxu0 0.0
        %789 = vmatpush.xpose.msra.mxu0 0.0
        %790 = vmatpush.xpose.msra.mxu0 0.0
        %791 = vmatpush.xpose.msra.mxu0 %v774
        %792 = vmatmul.f32.gmra.mxu0 %v770
        %v793 = vpop.f32.mrf.mxu0
        %v794 = vadd.f32 0.0, %v793
        %795 = vmatmul.f32.gmra.mxu0 %v772
        %v796 = vpop.f32.mrf.mxu0
        %v797 = vadd.f32 0.0, %v796
        %798 = vdwg.mxu0
        %v799 = vsel %vm423, %v794, -inf
        %800 = vmax.xlane.f32.xlu0 %v799
        %v801 = vpop.xlane.xlu0 %800
        %v802 = vsel %vm423, %v797, -inf
        %803 = vmax.xlane.f32.xlu0 %v802
        %v804 = vpop.xlane.xlu0 %803
        %v805 = vsub.f32 %v794, %v801
        %v806 = vsub.f32 %v797, %v804
        %v807 = vmul.f32 %v805, 1.442695
        %v808 = vpow.pop %v807
        %v809 = vmul.f32 %v806, 1.442695
        %v810 = vpow.pop %v809
        %v811 = vsel %vm423, %v808, 0.0
        %812 = vadd.xlane.f32.xlu0 %v811
        %v813 = vpop.xlane.xlu0 %812
        %v814 = vsel %vm423, %v810, 0.0
        %815 = vadd.xlane.f32.xlu0 %v814
        %v816 = vpop.xlane.xlu0 %815
        %v817 = vrcp.pop %v813
        %v818 = vmul.f32 %v813, %v817
        %v819 = vsub.f32 1.0, %v818
        %v820 = vmul.f32 %v817, %v819
        %v821 = vadd.f32 %v817, %v820
        %vm822 = vweird.f32 %v813
        %vm823 = vweird.f32 %v817
        %vm824 = vmor %vm822, %vm823
        %v825 = vsel %vm824, %v817, %v821
        %v826 = vand.u32 2147483647, %v813
        %vm827 = vcmp.eq.f32.partialorder %v826, 8.507059e+37
        %v828 = vand.u32 %v813, 2147483648
        %v829 = vor.u32 1.1754944e-38, %v828
        %v830 = vsel %vm827, %v829, %v825
        %v831 = vrcp.pop %v816
        %v832 = vmul.f32 %v816, %v831
        %v833 = vsub.f32 1.0, %v832
        %v834 = vmul.f32 %v831, %v833
        %v835 = vadd.f32 %v831, %v834
        %vm836 = vweird.f32 %v816
        %vm837 = vweird.f32 %v831
        %vm838 = vmor %vm836, %vm837
        %v839 = vsel %vm838, %v831, %v835
        %v840 = vand.u32 2147483647, %v816
        %vm841 = vcmp.eq.f32.partialorder %v840, 8.507059e+37
        %v842 = vand.u32 %v816, 2147483648
        %v843 = vor.u32 1.1754944e-38, %v842
        %v844 = vsel %vm841, %v843, %v839
        %v845 = vmul.f32 %v808, %v830
        %v846 = vmul.f32 %v810, %v844
        %847 = vrot.lane.b32.xlu0 %v762, 16
        %v848 = vpop.permute.xlu0 %847
        %v851 = vsel %vm423, %v845, 0
        %v854 = vsel %vm423, %v846, 0
        %856 = vmatpush.msra.mxu0 0.0
        %857 = vmatpush.msra.mxu0 0.0
        %858 = vmatpush.msra.mxu0 0.0
        %859 = vmatpush.msra.mxu0 0.0
        %860 = vmatpush.msra.mxu0 0.0
        %861 = vmatpush.msra.mxu0 0.0
        %862 = vmatpush.msra.mxu0 0.0
        %863 = vmatpush.msra.mxu0 0.0
        %864 = vmatpush.msra.mxu0 0.0
        %865 = vmatpush.msra.mxu0 0.0
        %866 = vmatpush.msra.mxu0 0.0
        %867 = vmatpush.msra.mxu0 0.0
        %868 = vmatpush.msra.mxu0 0.0
        %869 = vmatpush.msra.mxu0 0.0
        %870 = vmatpush.msra.mxu0 0.0
        %871 = vmatpush.msra.mxu0 %v848
        %872 = vmatmul.f32.gmra.mxu0 %v851
        %v873 = vpop.f32.mrf.mxu0
        %v874 = vadd.f32 0.0, %v873
        %875 = vmatmul.f32.gmra.mxu0 %v854
        %v876 = vpop.f32.mrf.mxu0
        %v877 = vadd.f32 0.0, %v876
        %878 = vdwg.mxu0
        %881 = vrot.lane.b32.xlu0 %v874, 48
        %v882 = vpop.permute.xlu0 %881
        %883 = vrot.lane.b32.xlu0 %v877, 48
        %v884 = vpop.permute.xlu0 %883
        %vm887 = vcmask 523648
        %888 = vst.msk [vmem:[#allocation3] sm:$0xff] %vm887, %v882
        %889 = vst.msk [vmem:[#allocation3 + $0x8] sm:$0xff] %vm887, %v884
        %v890 = vld [vmem:[#allocation3] sm:$0xff]
        %v891 = vld [vmem:[#allocation3 + $0x8] sm:$0xff]
        %v892 = vld [vmem:[%s4] sm:$0xff]
        %v893 = vld [vmem:[%s4 + $0x8] sm:$0xff]
        %v894 = vld [vmem:[%s4 + $0x10] sm:$0xff]
        %v895 = vld [vmem:[%s4 + $0x18] sm:$0xff]
        %v896 = vld [vmem:[%s4 + $0x20] sm:$0xff]
        %v897 = vld [vmem:[%s4 + $0x28] sm:$0xff]
        %v898 = vld [vmem:[%s4 + $0x30] sm:$0xff]
        %v899 = vld [vmem:[%s4 + $0x38] sm:$0xff]
        %v900 = vld [vmem:[%s5] sm:$0x1]
        %v902 = vperm.slane %v900, 0
        %vm904 = vcmask 523264
        %v906 = vsel %vm904, %v890, 0
        %v909 = vsel %vm904, %v891, 0
        %911 = vmatpush.msra.mxu0 0.0
        %912 = vmatpush.msra.mxu0 0.0
        %913 = vmatpush.msra.mxu0 0.0
        %914 = vmatpush.msra.mxu0 0.0
        %915 = vmatpush.msra.mxu0 0.0
        %916 = vmatpush.msra.mxu0 0.0
        %917 = vmatpush.msra.mxu0 0.0
        %918 = vmatpush.msra.mxu0 0.0
        %919 = vmatpush.msra.mxu0 %v899
        %920 = vmatpush.msra.mxu0 %v898
        %921 = vmatpush.msra.mxu0 %v897
        %922 = vmatpush.msra.mxu0 %v896
        %923 = vmatpush.msra.mxu0 %v895
        %924 = vmatpush.msra.mxu0 %v894
        %925 = vmatpush.msra.mxu0 %v893
        %926 = vmatpush.msra.mxu0 %v892
        %927 = vmatmul.f32.gmra.mxu0 %v906
        %v928 = vpop.f32.mrf.mxu0
        %v929 = vadd.f32 %v902, %v928
        %930 = vmatmul.f32.gmra.mxu0 %v909
        %v931 = vpop.f32.mrf.mxu0
        %v932 = vadd.f32 %v902, %v931
        %933 = vdwg.mxu0
        %934 = vst.msk [vmem:[%s308] sm:$0xff] %vm359, %v929
        %935 = vst.msk [vmem:[%s308 + $0x8] sm:$0xff] %vm359, %v932
        %s936 = sand.u32 %s183, 1
        %s937 = scalar_lea.sflag [#allocation6], %s936
        %s938 = sand.u32 %s183, 1
        %s939 = smul.addr %s938, 16
        %s940 = scalar_lea.vmem [#allocation7], %s939
        // Predicated region
        $region53: #{tpu_custom_call.1} parent=43 // pred_check
          %p941 = pneg %p193
        $region54: #{tpu_custom_call.1} parent=43 // pred_check_branch
          %943 = sbr.rel (%p941) target = $region56
        $region55: #{tpu_custom_call.1} parent=43 // pred_region
          %s944 = smul.u32 2, %s28
          %946 = vsyncadd %s937, 0
          %s947 = smul.addr %s27, 2
          %s948 = sadd.s32 %s944, %s947
          %s949 = smul.addr %s948, 8
          %s950 = scalar_lea.hbm %s6, %s949
          %s951 = sshll.u32 %s940, 4
          %s952 = int_to_ptr.vmem [resolvable:$true] %s951
          %s953 = sshll.u32 %s950, 4
          %s954 = int_to_ptr.hbm [resolvable:$true] %s953
          %959 = dma.vmem_to_hbm [thread:$0]  %s952, 256, %s954, %s937, 128, 128, 8
        $region56: #{tpu_custom_call.1} parent=43 // pred_fallthru
          _
      $region44: #{tpu_custom_call.1} parent=5 // pred_fallthru
        _
      %p960 = scmp.le.s32.totalorder 2, %s18
      // Predicated region
      $region57: #{tpu_custom_call.1} parent=5 // pred_check
        %p961 = pneg %p960
      $region58: #{tpu_custom_call.1} parent=5 // pred_check_branch
        %963 = sbr.rel (%p961) target = $region60
      $region59: #{tpu_custom_call.1} parent=5 // pred_region
        %s964 = ssub.s32 %s18, 2
        // Predicated region
        $region61: #{tpu_custom_call.1} parent=59 // pred_check
          %p965 = pneg %p199
        $region62: #{tpu_custom_call.1} parent=59 // pred_check_branch
          %967 = sbr.rel (%p965) target = $region64
        $region63: #{tpu_custom_call.1} parent=59 // pred_region
          %s968 = sand.u32 %s184, 1
          %s969 = scalar_lea.sflag [#allocation6], %s968
          %s970 = sand.u32 %s184, 1
          %s971 = smul.addr %s970, 16
          %s972 = scalar_lea.vmem [#allocation7], %s971
          %974 = dma.done %s969, 256
        $region64: #{tpu_custom_call.1} parent=59 // pred_fallthru
          _
      $region60: #{tpu_custom_call.1} parent=5 // pred_fallthru
        _
    $region6: #{tpu_custom_call.1} parent=1 // loop_footer
      %s22 = sadd.s32 1, %s18
    $region7: #{tpu_custom_call.1} parent=1 // loop_footer_branch
      %17 = sbr.rel target = $region3
    $region8: #{tpu_custom_call.1} parent=1 // loop_exit
      _
    %975 = vsyncpa [#allocation5], 1
    %s976 = scalar_lea.sflag [#allocation5], 1
    %977 = vsyncpa %s976, 1
    %978 = vsyncpa [#allocation6], 1
    %s979 = scalar_lea.sflag [#allocation6], 1
    %980 = vsyncpa %s979, 1

</llo_original>
